<compile_context>
chip_gen: v6e
topology: v6e:2x2x1
jax: 0.10.0
libtpu: 0.0.40
codegen_flags: <defaults>
</compile_context>

<pallas_src>
import functools

import numpy as np
import jax
import jax.numpy as jnp
from jax.experimental import pallas as pl
from jax.experimental.pallas import tpu as pltpu

EPS = 1e-5

# Largest M-tile for the 1x1 / elementwise stages; _pick_tile shrinks it to a
# divisor of M that is sublane(8)-aligned and fits the scoped-VMEM budget.
TM_TARGET = 1024


def _default_vmem_limit():
    """Generation-aware scoped-VMEM budget: ~3/4 of physical VMEM, capped at
    100 MiB (v5e/v6e: 128 MiB physical -> ~96 MiB; v7x: 64 MiB -> ~48 MiB).
    Conservative fallback if the trace-time query is unavailable."""
    try:
        info = pltpu.get_tpu_info()
        cap = getattr(info, "vmem_capacity_bytes", None)
        if cap is None:
            cap = getattr(info, "vmem_size_bytes", 128 * 1024 * 1024)
        return int(min(100 * 1024 * 1024, (int(cap) * 3) // 4))
    except Exception:
        return 32 * 1024 * 1024


VMEM_LIMIT_BYTES = _default_vmem_limit()


def _mosaic_params():
    return pltpu.CompilerParams(
        dimension_semantics=("parallel",),
        vmem_limit_bytes=VMEM_LIMIT_BYTES,
    )


def _pick_tile(m, row_bytes, target=TM_TARGET):
    """Largest divisor of m that is a multiple of 8, <= target, and whose
    double-buffered in+out blocks stay within ~2/3 of the scoped-VMEM budget."""
    cap = max(8, min(target, VMEM_LIMIT_BYTES // (6 * max(row_bytes, 1))))
    if m <= cap:
        return m
    for t in range(cap, 7, -1):
        if m % t == 0 and t % 8 == 0:
            return t
    # TODO(synk): pad M (or use a masked tail tile) for awkward M; with the
    # hw % 8 == 0 requirement M is always a multiple of 8, so t == 8 above
    # always matches and this fallback is effectively unreachable.
    return m


def _rep8(v):
    # (1, C) -> (1, 8, C): replicate along sublanes so each per-tile stats
    # store is a full, tile-aligned (8, C) block (no 1-row masked stores).
    return jnp.broadcast_to(v[:, None, :], (1, 8, v.shape[-1]))


# ----------------------------------------------------------------------------
# Pallas kernels
# ----------------------------------------------------------------------------
def _conv1x1_stats_kernel(x_ref, w_ref, y_ref, s_ref, ss_ref):
    y = jnp.dot(x_ref[...].astype(w_ref.dtype), w_ref[...],
                preferred_element_type=jnp.float32)
    y_ref[...] = y.astype(y_ref.dtype)
    # Fused per-tile BN batch stats (epilogue; y tile is still in VMEM).
    s_ref[...] = _rep8(jnp.sum(y, axis=0, keepdims=True))
    ss_ref[...] = _rep8(jnp.sum(y * y, axis=0, keepdims=True))


def _bn_relu_conv1x1_stats_kernel(x_ref, scale_ref, shift_ref, w_ref,
                                  y_ref, s_ref, ss_ref):
    # BN + ReLU of the previous conv fused into this matmul's prologue.
    # Elementwise math in f32 (scale/shift are f32) regardless of act dtype.
    a = jnp.maximum(x_ref[...].astype(jnp.float32) * scale_ref[...]
                    + shift_ref[...], 0.0)
    y = jnp.dot(a.astype(w_ref.dtype), w_ref[...],
                preferred_element_type=jnp.float32)
    y_ref[...] = y.astype(y_ref.dtype)
    s_ref[...] = _rep8(jnp.sum(y, axis=0, keepdims=True))
    ss_ref[...] = _rep8(jnp.sum(y * y, axis=0, keepdims=True))


def _bn_relu_conv3x3_stats_kernel(a_ref, scale_ref, shift_ref, w_ref,
                                  y_ref, s_ref, ss_ref, xpad_ref,
                                  *, W, pad):
    # One image (flattened H*W rows) per grid step.
    hw, c = a_ref.shape
    cout = w_ref.shape[2]

    # Zero ONLY the halo rows (the hw middle rows are fully overwritten just
    # below).  This is done every step — not under pl.when(program_id == 0) —
    # so it remains correct if this "parallel" grid axis is sharded across
    # TensorCores (per-core scratch on v7x megacore); 2*pad rows is tiny
    # compared with the hw-row middle we no longer re-zero.
    zeros_halo = jnp.zeros((pad, c), xpad_ref.dtype)
    xpad_ref[pl.ds(0, pad), :] = zeros_halo
    xpad_ref[pl.ds(pad + hw, pad), :] = zeros_halo

    # BN + ReLU prologue in f32, stored at the MXU feed dtype.
    a = jnp.maximum(a_ref[...].astype(jnp.float32) * scale_ref[...]
                    + shift_ref[...], 0.0)
    xpad_ref[pl.ds(pad, hw), :] = a.astype(xpad_ref.dtype)

    # In-kernel column-edge masks: only the dx = +-1 taps need masking
    # (dy = +-1 out-of-image rows already read zeros from the halo).
    col = jax.lax.broadcasted_iota(jnp.int32, (hw, 1), 0) % W
    mask_l = (col != 0).astype(xpad_ref.dtype)        # dx = -1 (kx = 0)
    mask_r = (col != W - 1).astype(xpad_ref.dtype)    # dx = +1 (kx = 2)

    # 3 matmuls with K = 3*Cin (dx taps stacked along channels per ky) instead
    # of 9 with K = Cin: keeps the 256-deep v6e/v7x MXU fed.
    acc = jnp.zeros((hw, cout), jnp.float32)
    for ky in range(3):
        base = pad + (ky - 1) * W
        left = xpad_ref[pl.ds(base - 1, hw), :] * mask_l
        mid = xpad_ref[pl.ds(base, hw), :]
        right = xpad_ref[pl.ds(base + 1, hw), :] * mask_r
        lhs = jnp.concatenate([left, mid, right], axis=-1)      # (hw, 3*Cin)
        acc = acc + jnp.dot(lhs, w_ref[ky],
                            preferred_element_type=jnp.float32)

    y_ref[...] = acc.astype(y_ref.dtype)
    s_ref[...] = _rep8(jnp.sum(acc, axis=0, keepdims=True))
    ss_ref[...] = _rep8(jnp.sum(acc * acc, axis=0, keepdims=True))


def _bn_add_relu_kernel(x_ref, scale_ref, shift_ref, r_ref, o_ref):
    o_ref[...] = jnp.maximum(
        x_ref[...].astype(jnp.float32) * scale_ref[...] + shift_ref[...]
        + r_ref[...].astype(jnp.float32), 0.0)


# ----------------------------------------------------------------------------
# Pallas wrappers
# ----------------------------------------------------------------------------
def conv1x1_stats(x, w, *, tm):
    m, k = x.shape
    n = w.shape[1]
    t = m // tm
    return pl.pallas_call(
        _conv1x1_stats_kernel,
        out_shape=(jax.ShapeDtypeStruct((m, n), x.dtype),
                   jax.ShapeDtypeStruct((t, 8, n), jnp.float32),
                   jax.ShapeDtypeStruct((t, 8, n), jnp.float32)),
        grid_spec=pltpu.PrefetchScalarGridSpec(
            num_scalar_prefetch=0,
            grid=(t,),
            in_specs=[pl.BlockSpec((tm, k), lambda i: (i, 0)),
                      pl.BlockSpec((k, n), lambda i: (0, 0))],
            out_specs=(pl.BlockSpec((tm, n), lambda i: (i, 0)),
                       pl.BlockSpec((1, 8, n), lambda i: (i, 0, 0)),
                       pl.BlockSpec((1, 8, n), lambda i: (i, 0, 0)))),
        compiler_params=_mosaic_params(),
    )(x, w)


def bn_relu_conv1x1_stats(x, scale, shift, w, *, tm):
    m, k = x.shape
    n = w.shape[1]
    t = m // tm
    return pl.pallas_call(
        _bn_relu_conv1x1_stats_kernel,
        out_shape=(jax.ShapeDtypeStruct((m, n), x.dtype),
                   jax.ShapeDtypeStruct((t, 8, n), jnp.float32),
                   jax.ShapeDtypeStruct((t, 8, n), jnp.float32)),
        grid_spec=pltpu.PrefetchScalarGridSpec(
            num_scalar_prefetch=0,
            grid=(t,),
            in_specs=[pl.BlockSpec((tm, k), lambda i: (i, 0)),
                      pl.BlockSpec((1, k), lambda i: (0, 0)),
                      pl.BlockSpec((1, k), lambda i: (0, 0)),
                      pl.BlockSpec((k, n), lambda i: (0, 0))],
            out_specs=(pl.BlockSpec((tm, n), lambda i: (i, 0)),
                       pl.BlockSpec((1, 8, n), lambda i: (i, 0, 0)),
                       pl.BlockSpec((1, 8, n), lambda i: (i, 0, 0)))),
        compiler_params=_mosaic_params(),
    )(x, scale, shift, w)


def bn_relu_conv3x3_stats(y1, scale, shift, w2k, *, n_img, H, W):
    """Fused BN+ReLU prologue -> 3x3 conv (pad=1, stride=1) -> BN partial stats.

    w2k: (3, 3*Cin, Cout) — the 3x3 taps stacked along K per ky row (kx-major),
    matching the in-kernel [dx=-1 | dx=0 | dx=+1] channel concatenation.
    """
    m, c = y1.shape
    cout = w2k.shape[2]
    hw = H * W
    assert m == n_img * hw, (m, n_img, hw)
    # TODO(synk): hw % 8 != 0 (e.g. 14x14 / 7x7 ResNet stages) needs a padded
    # spatial layout; not handled here.
    assert hw % 8 == 0, hw

    pad = -(-(W + 1) // 8) * 8  # sublane-aligned halo >= W+1 (max |tap shift|)

    kernel = functools.partial(_bn_relu_conv3x3_stats_kernel, W=W, pad=pad)
    # TODO(synk): for large H*W, tile rows within each image (with a W-row
    # halo) so VMEM and the f32 accumulator stop scaling with H*W (matters
    # most under v7x's 64 MiB VMEM).
    return pl.pallas_call(
        kernel,
        out_shape=(jax.ShapeDtypeStruct((m, cout), y1.dtype),
                   jax.ShapeDtypeStruct((n_img, 8, cout), jnp.float32),
                   jax.ShapeDtypeStruct((n_img, 8, cout), jnp.float32)),
        grid_spec=pltpu.PrefetchScalarGridSpec(
            num_scalar_prefetch=0,
            grid=(n_img,),
            in_specs=[pl.BlockSpec((hw, c), lambda i: (i, 0)),
                      pl.BlockSpec((1, c), lambda i: (0, 0)),
                      pl.BlockSpec((1, c), lambda i: (0, 0)),
                      pl.BlockSpec((3, 3 * c, cout), lambda i: (0, 0, 0))],
            out_specs=(pl.BlockSpec((hw, cout), lambda i: (i, 0)),
                       pl.BlockSpec((1, 8, cout), lambda i: (i, 0, 0)),
                       pl.BlockSpec((1, 8, cout), lambda i: (i, 0, 0))),
            scratch_shapes=[pltpu.VMEM((hw + 2 * pad, c), w2k.dtype)]),
        compiler_params=_mosaic_params(),
    )(y1, scale, shift, w2k)


def bn_add_relu(x, scale, shift, residual, *, tm):
    m, c = x.shape
    return pl.pallas_call(
        _bn_add_relu_kernel,
        out_shape=jax.ShapeDtypeStruct((m, c), jnp.float32),
        grid_spec=pltpu.PrefetchScalarGridSpec(
            num_scalar_prefetch=0,
            grid=(m // tm,),
            in_specs=[pl.BlockSpec((tm, c), lambda i: (i, 0)),
                      pl.BlockSpec((1, c), lambda i: (0, 0)),
                      pl.BlockSpec((1, c), lambda i: (0, 0)),
                      pl.BlockSpec((tm, c), lambda i: (i, 0))],
            out_specs=pl.BlockSpec((tm, c), lambda i: (i, 0))),
        compiler_params=_mosaic_params(),
    )(x, scale, shift, residual)


# ----------------------------------------------------------------------------
# Glue: BN scale/shift from fused partial stats, params, full block forward
# ----------------------------------------------------------------------------
def _bn_scale_shift(s, ss, m, gamma, beta):
    # s/ss: (T, 8, C) per-tile partial sums (each of the 8 sublane rows holds
    # the same value; row 0 is taken).
    # TODO(synk): E[x^2]-E[x]^2 in f32 can cancel for large-mean activations;
    # a shifted-moment / Welford formulation would be safer for training use.
    total = jnp.sum(s[:, 0, :], axis=0)
    total_sq = jnp.sum(ss[:, 0, :], axis=0)
    mean = total / m
    var = jnp.maximum(total_sq / m - mean * mean, 0.0)  # biased; clamp >= 0
    scale = gamma / jnp.sqrt(var + EPS)
    shift = beta - mean * scale
    return scale.reshape(1, -1), shift.reshape(1, -1)


def init_params(key, in_channels, out_channels):
    """Deterministic synthetic init; PyTorch weight layouts (OIHW)."""
    exp = 4
    ks = jax.random.split(key, 6)
    return {
        "w1": jax.random.normal(ks[0], (out_channels, in_channels, 1, 1), jnp.float32) * 0.1,
        "b1": jax.random.normal(ks[1], (out_channels,), jnp.float32) * 0.05,
        "w2": jax.random.normal(ks[2], (out_channels, out_channels, 3, 3), jnp.float32) * 0.1,
        "b2": jax.random.normal(ks[3], (out_channels,), jnp.float32) * 0.05,
        "w3": jax.random.normal(ks[4], (out_channels * exp, out_channels, 1, 1), jnp.float32) * 0.1,
        "b3": jax.random.normal(ks[5], (out_channels * exp,), jnp.float32) * 0.05,
        # Fresh BatchNorm2d affine params: gamma=1, beta=0.
        "g1": jnp.ones((out_channels,), jnp.float32),
        "bt1": jnp.zeros((out_channels,), jnp.float32),
        "g2": jnp.ones((out_channels,), jnp.float32),
        "bt2": jnp.zeros((out_channels,), jnp.float32),
        "g3": jnp.ones((out_channels * exp,), jnp.float32),
        "bt3": jnp.zeros((out_channels * exp,), jnp.float32),
    }


def _block_forward_impl(x_nhwc, p, stride, act_dtype, mxu_dtype):
    # identity_downsample is None in this module instantiation -> the residual
    # is the raw input, which requires stride == 1 and Cin == 4*out_channels.
    # TODO(synk): stride != 1 / identity_downsample branch not implemented
    # (only meaningful with a downsample branch, which this instance lacks).
    assert stride == 1, "identity residual path requires stride == 1"

    n, h, w, cin = x_nhwc.shape
    c1 = p["w1"].shape[0]
    c3 = p["w3"].shape[0]
    assert cin == c3, "residual add requires in_channels == 4*out_channels"

    m = n * h * w

    # PyTorch OIHW weights -> matmul layouts, cast to the MXU feed dtype.
    # Conv biases are dropped: each conv feeds a training-mode BatchNorm which
    # subtracts the batch mean, so a per-channel constant bias cancels exactly.
    w1 = jnp.transpose(p["w1"][:, :, 0, 0]).astype(mxu_dtype)           # (Cin, C1)
    w2 = jnp.transpose(p["w2"], (2, 3, 1, 0)).reshape(3, 3 * c1, c1)    # (ky, kx*Cin, Cout)
    w2 = w2.astype(mxu_dtype)
    w3 = jnp.transpose(p["w3"][:, :, 0, 0]).astype(mxu_dtype)           # (C1, C3)

    xf = x_nhwc.astype(act_dtype).reshape(m, cin)
    esz = jnp.dtype(act_dtype).itemsize

    # stage 1: conv1 (1x1) + fused BN1 batch stats
    y1, s1, ss1 = conv1x1_stats(xf, w1, tm=_pick_tile(m, (cin + c1) * esz))
    scale1, shift1 = _bn_scale_shift(s1, ss1, m, p["g1"], p["bt1"])

    # stage 2: BN1+ReLU prologue -> 3x3 conv (in Pallas) + fused BN2 stats
    y2, s2, ss2 = bn_relu_conv3x3_stats(y1, scale1, shift1, w2,
                                        n_img=n, H=h, W=w)
    scale2, shift2 = _bn_scale_shift(s2, ss2, m, p["g2"], p["bt2"])

    # stage 3: BN2+ReLU prologue -> conv3 (1x1) + fused BN3 stats
    y3, s3, ss3 = bn_relu_conv1x1_stats(y2, scale2, shift2, w3,
                                        tm=_pick_tile(m, (c1 + c3) * esz))
    scale3, shift3 = _bn_scale_shift(s3, ss3, m, p["g3"], p["bt3"])

    # stage 4: BN3 + residual add + ReLU (fused elementwise)
    out = bn_add_relu(y3, scale3, shift3, xf,
                      tm=_pick_tile(m, (2 * esz + 4) * c3))
    return out.reshape(n, h, w, c3)


@functools.partial(jax.jit, static_argnames=("stride", "act_dtype", "mxu_dtype"))
def block_forward_nhwc(x_nhwc, p, stride=1,
                       act_dtype=jnp.float32, mxu_dtype=jnp.float32):
    """NHWC entry point: no NCHW<->NHWC HBM transposes around the block."""
    return _block_forward_impl(x_nhwc, p, stride, act_dtype, mxu_dtype)


@functools.partial(jax.jit, static_argnames=("stride", "act_dtype", "mxu_dtype"))
def block_forward(x_nchw, p, stride=1,
                  act_dtype=jnp.float32, mxu_dtype=jnp.float32):
    """NCHW adapter (parity with the PyTorch module); prefer block_forward_nhwc
    in a channels-last pipeline to avoid two extra HBM passes."""
    x = jnp.transpose(x_nchw, (0, 2, 3, 1)).astype(jnp.float32)  # NHWC
    out = _block_forward_impl(x, p, stride, act_dtype, mxu_dtype)
    return jnp.transpose(out, (0, 3, 1, 2))  # back to NCHW


# ----------------------------------------------------------------------------
# Pure-JAX reference (for correctness check)
# ----------------------------------------------------------------------------
def reference_forward(x, p, stride=1):
    def conv(x, w, b, s, pad):
        y = jax.lax.conv_general_dilated(
            x, w, (s, s), [(pad, pad), (pad, pad)],
            dimension_numbers=("NCHW", "OIHW", "NCHW"))
        return y + b[None, :, None, None]

    def bn(x, g, bt):
        mean = x.mean(axis=(0, 2, 3), keepdims=True)
        var = x.var(axis=(0, 2, 3), keepdims=True)  # biased, training-mode BN
        return ((x - mean) / jnp.sqrt(var + EPS) * g[None, :, None, None]
                + bt[None, :, None, None])

    y = jax.nn.relu(bn(conv(x, p["w1"], p["b1"], 1, 0), p["g1"], p["bt1"]))
    y = jax.nn.relu(bn(conv(y, p["w2"], p["b2"], stride, 1), p["g2"], p["bt2"]))
    y = bn(conv(y, p["w3"], p["b3"], 1, 0), p["g3"], p["bt3"])
    return jax.nn.relu(y + x)


if __name__ == "__main__":
    key = jax.random.PRNGKey(0)
    kx, kp = jax.random.split(key)

    in_channels, out_channels = 16, 4   # in_channels == 4*out_channels
    N, H, W = 2, 8, 8                   # M = N*H*W = 128 rows

    x = jax.random.normal(kx, (N, in_channels, H, W), jnp.float32)
    params = init_params(kp, in_channels, out_channels)

    # f32 path: tight check against the pure-JAX reference.
    y = jax.block_until_ready(block_forward(x, params, stride=1))
    assert y.shape == (N, out_channels * 4, H, W), y.shape
    y_ref = reference_forward(x, params, stride=1)
    np.testing.assert_allclose(np.asarray(y), np.asarray(y_ref),
                               rtol=1e-3, atol=1e-3)

    # bf16 path (production setting on v5e/v6e/v7x: bf16 MXU feeds + bf16
    # inter-stage activation storage; BN / elementwise math stays f32).
    y_bf = jax.block_until_ready(
        block_forward(x, params, stride=1,
                      act_dtype=jnp.bfloat16, mxu_dtype=jnp.bfloat16))
    assert y_bf.shape == y.shape
    diff = np.asarray(y_bf, np.float32) - np.asarray(y_ref, np.float32)
    rel = float(np.linalg.norm(diff) /
                max(float(np.linalg.norm(np.asarray(y_ref))), 1e-6))
    assert rel < 5e-2, f"bf16 path relative L2 error too large: {rel}"

    print("KERNEL_OK")
</pallas_src>

<mosaic_0001>
module attributes {stable_mosaic.version = 11 : i64} {
  func.func @_conv1x1_stats_kernel(%arg0: i32, %arg1: memref<128x16xf32, #tpu.memory_space<vmem>>, %arg2: memref<16x4xf32, #tpu.memory_space<vmem>>, %arg3: memref<128x4xf32, #tpu.memory_space<vmem>>, %arg4: memref<1x8x4xf32, #tpu.memory_space<vmem>>, %arg5: memref<1x8x4xf32, #tpu.memory_space<vmem>>) attributes {dimension_semantics = [#tpu.dimension_semantics<parallel>], iteration_bounds = array<i64: 1>, scalar_prefetch = 0 : i64, scratch_operands = 0 : i64, tpu.core_type = #tpu.core_type<tc>, window_params = [{transform_indices = @transform_0, window_bounds = array<i64: 128, 16>}, {pipeline_mode = #tpu.pipeline_mode<synchronous>, transform_indices = @transform_1, window_bounds = array<i64: 16, 4>}, {transform_indices = @transform_2, window_bounds = array<i64: 128, 4>}, {transform_indices = @transform_3, window_bounds = array<i64: 1, 8, 4>}, {transform_indices = @transform_4, window_bounds = array<i64: 1, 8, 4>}]} {
    %c0 = arith.constant 0 : index
    %c0_0 = arith.constant 0 : index
    %0 = vector.load %arg1[%c0, %c0_0] : memref<128x16xf32, #tpu.memory_space<vmem>>, vector<128x16xf32>
    %c0_1 = arith.constant 0 : index
    %c0_2 = arith.constant 0 : index
    %1 = vector.load %arg2[%c0_1, %c0_2] : memref<16x4xf32, #tpu.memory_space<vmem>>, vector<16x4xf32>
    %cst = arith.constant dense<0.000000e+00> : vector<128x4xf32>
    %2 = tpu.matmul %0, %1, %cst {dimension_numbers = #tpu.dot_dimension_numbers<[1], [0], [0], [1], [0, 0, 1, 1], [], []>} : vector<128x16xf32>, vector<16x4xf32>, vector<128x4xf32> -> vector<128x4xf32>
    %c0_3 = arith.constant 0 : index
    %c0_4 = arith.constant 0 : index
    %3 = vector.load %arg3[%c0_3, %c0_4] : memref<128x4xf32, #tpu.memory_space<vmem>>, vector<128x4xf32>
    tpu.vector_store %arg3[%c0_3, %c0_4], %2 {strides = array<i32>} : memref<128x4xf32, #tpu.memory_space<vmem>>, vector<128x4xf32>,
    %cst_5 = arith.constant dense<0.000000e+00> : vector<4xf32>
    %4 = vector.multi_reduction <add>, %2, %cst_5 [0] : vector<128x4xf32> to vector<4xf32>
    %5 = vector.shape_cast %4 : vector<4xf32> to vector<1x4xf32>
    %6 = vector.shape_cast %5 : vector<1x4xf32> to vector<1x1x4xf32>
    %7 = vector.shape_cast %6 : vector<1x1x4xf32> to vector<1x1x4xf32>
    %8 = vector.broadcast %7 : vector<1x1x4xf32> to vector<1x8x4xf32>
    %c0_6 = arith.constant 0 : index
    %c0_7 = arith.constant 0 : index
    %c0_8 = arith.constant 0 : index
    %9 = vector.load %arg4[%c0_6, %c0_7, %c0_8] : memref<1x8x4xf32, #tpu.memory_space<vmem>>, vector<1x8x4xf32>
    tpu.vector_store %arg4[%c0_6, %c0_7, %c0_8], %8 {strides = array<i32>} : memref<1x8x4xf32, #tpu.memory_space<vmem>>, vector<1x8x4xf32>,
    %10 = arith.mulf %2, %2 : vector<128x4xf32>
    %cst_9 = arith.constant dense<0.000000e+00> : vector<4xf32>
    %11 = vector.multi_reduction <add>, %10, %cst_9 [0] : vector<128x4xf32> to vector<4xf32>
    %12 = vector.shape_cast %11 : vector<4xf32> to vector<1x4xf32>
    %13 = vector.shape_cast %12 : vector<1x4xf32> to vector<1x1x4xf32>
    %14 = vector.shape_cast %13 : vector<1x1x4xf32> to vector<1x1x4xf32>
    %15 = vector.broadcast %14 : vector<1x1x4xf32> to vector<1x8x4xf32>
    %c0_10 = arith.constant 0 : index
    %c0_11 = arith.constant 0 : index
    %c0_12 = arith.constant 0 : index
    %16 = vector.load %arg5[%c0_10, %c0_11, %c0_12] : memref<1x8x4xf32, #tpu.memory_space<vmem>>, vector<1x8x4xf32>
    tpu.vector_store %arg5[%c0_10, %c0_11, %c0_12], %15 {strides = array<i32>} : memref<1x8x4xf32, #tpu.memory_space<vmem>>, vector<1x8x4xf32>,
    return
  }
  func.func @transform_0(%arg0: i32) -> (i32, i32) {
    %c0_i32 = arith.constant 0 : i32
    %c0_i32_0 = arith.constant 0 : i32
    return %arg0, %c0_i32 : i32, i32
  }
  func.func @transform_1(%arg0: i32) -> (i32, i32) {
    %c0_i32 = arith.constant 0 : i32
    %c0_i32_0 = arith.constant 0 : i32
    %c0_i32_1 = arith.constant 0 : i32
    return %c0_i32, %c0_i32_0 : i32, i32
  }
  func.func @transform_2(%arg0: i32) -> (i32, i32) {
    %c0_i32 = arith.constant 0 : i32
    %c0_i32_0 = arith.constant 0 : i32
    return %arg0, %c0_i32 : i32, i32
  }
  func.func @transform_3(%arg0: i32) -> (i32, i32, i32) {
    %c0_i32 = arith.constant 0 : i32
    %c0_i32_0 = arith.constant 0 : i32
    %c0_i32_1 = arith.constant 0 : i32
    return %arg0, %c0_i32, %c0_i32_0 : i32, i32, i32
  }
  func.func @transform_4(%arg0: i32) -> (i32, i32, i32) {
    %c0_i32 = arith.constant 0 : i32
    %c0_i32_0 = arith.constant 0 : i32
    %c0_i32_1 = arith.constant 0 : i32
    return %arg0, %c0_i32, %c0_i32_0 : i32, i32, i32
  }
}

module attributes {stable_mosaic.version = 11 : i64} {
  func.func @_bn_relu_conv3x3_stats_kernel(%arg0: i32, %arg1: memref<64x4xf32, #tpu.memory_space<vmem>>, %arg2: memref<1x4xf32, #tpu.memory_space<vmem>>, %arg3: memref<1x4xf32, #tpu.memory_space<vmem>>, %arg4: memref<3x12x4xf32, #tpu.memory_space<vmem>>, %arg5: memref<64x4xf32, #tpu.memory_space<vmem>>, %arg6: memref<1x8x4xf32, #tpu.memory_space<vmem>>, %arg7: memref<1x8x4xf32, #tpu.memory_space<vmem>>, %arg8: memref<96x4xf32, #tpu.memory_space<vmem>>) attributes {dimension_semantics = [#tpu.dimension_semantics<parallel>], iteration_bounds = array<i64: 2>, scalar_prefetch = 0 : i64, scratch_operands = 1 : i64, tpu.core_type = #tpu.core_type<tc>, window_params = [{transform_indices = @transform_0, window_bounds = array<i64: 64, 4>}, {pipeline_mode = #tpu.pipeline_mode<synchronous>, transform_indices = @transform_1, window_bounds = array<i64: 1, 4>}, {pipeline_mode = #tpu.pipeline_mode<synchronous>, transform_indices = @transform_2, window_bounds = array<i64: 1, 4>}, {pipeline_mode = #tpu.pipeline_mode<synchronous>, transform_indices = @transform_3, window_bounds = array<i64: 3, 12, 4>}, {transform_indices = @transform_4, window_bounds = array<i64: 64, 4>}, {transform_indices = @transform_5, window_bounds = array<i64: 1, 8, 4>}, {transform_indices = @transform_6, window_bounds = array<i64: 1, 8, 4>}]} {
    %cst = arith.constant 0.000000e+00 : f32
    %0 = vector.broadcast %cst : f32 to vector<16x4xf32>
    %c0 = arith.constant 0 : index
    %c0_0 = arith.constant 0 : index
    %1 = vector.load %arg8[%c0, %c0_0] : memref<96x4xf32, #tpu.memory_space<vmem>>, vector<16x4xf32>
    tpu.vector_store %arg8[%c0, %c0_0], %0 {strides = array<i32>} : memref<96x4xf32, #tpu.memory_space<vmem>>, vector<16x4xf32>,
    %c80 = arith.constant 80 : index
    %c0_1 = arith.constant 0 : index
    %2 = vector.load %arg8[%c80, %c0_1] : memref<96x4xf32, #tpu.memory_space<vmem>>, vector<16x4xf32>
    tpu.vector_store %arg8[%c80, %c0_1], %0 {strides = array<i32>} : memref<96x4xf32, #tpu.memory_space<vmem>>, vector<16x4xf32>,
    %c0_2 = arith.constant 0 : index
    %c0_3 = arith.constant 0 : index
    %3 = vector.load %arg1[%c0_2, %c0_3] : memref<64x4xf32, #tpu.memory_space<vmem>>, vector<64x4xf32>
    %c0_4 = arith.constant 0 : index
    %c0_5 = arith.constant 0 : index
    %4 = vector.load %arg2[%c0_4, %c0_5] : memref<1x4xf32, #tpu.memory_space<vmem>>, vector<1x4xf32>
    %5 = vector.broadcast %4 : vector<1x4xf32> to vector<64x4xf32>
    %6 = arith.mulf %3, %5 : vector<64x4xf32>
    %c0_6 = arith.constant 0 : index
    %c0_7 = arith.constant 0 : index
    %7 = vector.load %arg3[%c0_6, %c0_7] : memref<1x4xf32, #tpu.memory_space<vmem>>, vector<1x4xf32>
    %8 = vector.broadcast %7 : vector<1x4xf32> to vector<64x4xf32>
    %9 = arith.addf %6, %8 : vector<64x4xf32>
    %cst_8 = arith.constant 0.000000e+00 : f32
    %10 = vector.broadcast %cst_8 : f32 to vector<64x4xf32>
    %11 = arith.maximumf %9, %10 : vector<64x4xf32>
    %c16 = arith.constant 16 : index
    %c0_9 = arith.constant 0 : index
    %12 = vector.load %arg8[%c16, %c0_9] : memref<96x4xf32, #tpu.memory_space<vmem>>, vector<64x4xf32>
    tpu.vector_store %arg8[%c16, %c0_9], %11 {strides = array<i32>} : memref<96x4xf32, #tpu.memory_space<vmem>>, vector<64x4xf32>,
    %13 = tpu.iota {dimensions = array<i32: 0>} : vector<64x1xi32>
    %c8_i32 = arith.constant 8 : i32
    %c0_i32 = arith.constant 0 : i32
    %14 = arith.cmpi eq, %c8_i32, %c0_i32 : i32
    %c1_i32 = arith.constant 1 : i32
    %15 = arith.select %14, %c1_i32, %c8_i32 : i32
    %16 = vector.broadcast %15 : i32 to vector<64x1xi32>
    %17 = arith.remsi %13, %16 : vector<64x1xi32>
    %c0_i32_10 = arith.constant 0 : i32
    %18 = vector.broadcast %c0_i32_10 : i32 to vector<64x1xi32>
    %19 = arith.cmpi ne, %17, %18 : vector<64x1xi32>
    %c0_i32_11 = arith.constant 0 : i32
    %20 = vector.broadcast %c0_i32_11 : i32 to vector<64x1xi32>
    %21 = arith.cmpi slt, %17, %20 : vector<64x1xi32>
    %c0_i32_12 = arith.constant 0 : i32
    %22 = arith.cmpi slt, %15, %c0_i32_12 : i32
    %23 = vector.broadcast %22 : i1 to vector<64x1xi1>
    %24 = vector.broadcast %23 : vector<64x1xi1> to vector<64x1xi1>
    %25 = arith.xori %21, %24 : vector<64x1xi1>
    %26 = arith.andi %25, %19 : vector<64x1xi1>
    %27 = vector.broadcast %15 : i32 to vector<64x1xi32>
    %28 = arith.addi %17, %27 : vector<64x1xi32>
    %29 = arith.select %26, %28, %17 : vector<64x1xi1>, vector<64x1xi32>
    %c0_i32_13 = arith.constant 0 : i32
    %30 = vector.broadcast %c0_i32_13 : i32 to vector<64x1xi32>
    %31 = arith.cmpi ne, %29, %30 : vector<64x1xi32>
    %32 = arith.extui %31 : vector<64x1xi1> to vector<64x1xi32>
    %33 = arith.sitofp %32 : vector<64x1xi32> to vector<64x1xf32>
    %c7_i32 = arith.constant 7 : i32
    %34 = vector.broadcast %c7_i32 : i32 to vector<64x1xi32>
    %35 = arith.cmpi ne, %29, %34 : vector<64x1xi32>
    %36 = arith.extui %35 : vector<64x1xi1> to vector<64x1xi32>
    %37 = arith.sitofp %36 : vector<64x1xi32> to vector<64x1xf32>
    %cst_14 = arith.constant 0.000000e+00 : f32
    %38 = vector.broadcast %cst_14 : f32 to vector<64x4xf32>
    %c7 = arith.constant 7 : index
    %c0_15 = arith.constant 0 : index
    %39 = vector.load %arg8[%c7, %c0_15] : memref<96x4xf32, #tpu.memory_space<vmem>>, vector<64x4xf32>
    %40 = vector.broadcast %33 : vector<64x1xf32> to vector<64x4xf32>
    %41 = arith.mulf %39, %40 : vector<64x4xf32>
    %c8 = arith.constant 8 : index
    %c0_16 = arith.constant 0 : index
    %42 = vector.load %arg8[%c8, %c0_16] : memref<96x4xf32, #tpu.memory_space<vmem>>, vector<64x4xf32>
    %c9 = arith.constant 9 : index
    %c0_17 = arith.constant 0 : index
    %43 = vector.load %arg8[%c9, %c0_17] : memref<96x4xf32, #tpu.memory_space<vmem>>, vector<64x4xf32>
    %44 = vector.broadcast %37 : vector<64x1xf32> to vector<64x4xf32>
    %45 = arith.mulf %43, %44 : vector<64x4xf32>
    %46 = tpu.concatenate %41, %42, %45 in 1 : vector<64x4xf32>, vector<64x4xf32>, vector<64x4xf32> -> vector<64x12xf32>
    %c0_18 = arith.constant 0 : index
    %c0_19 = arith.constant 0 : index
    %c0_20 = arith.constant 0 : index
    %47 = vector.load %arg4[%c0_18, %c0_19, %c0_20] : memref<3x12x4xf32, #tpu.memory_space<vmem>>, vector<1x12x4xf32>
    %48 = vector.shape_cast %47 : vector<1x12x4xf32> to vector<12x4xf32>
    %cst_21 = arith.constant dense<0.000000e+00> : vector<64x4xf32>
    %49 = tpu.matmul %46, %48, %cst_21 {dimension_numbers = #tpu.dot_dimension_numbers<[1], [0], [0], [1], [0, 0, 1, 1], [], []>} : vector<64x12xf32>, vector<12x4xf32>, vector<64x4xf32> -> vector<64x4xf32>
    %50 = arith.addf %38, %49 : vector<64x4xf32>
    %c15 = arith.constant 15 : index
    %c0_22 = arith.constant 0 : index
    %51 = vector.load %arg8[%c15, %c0_22] : memref<96x4xf32, #tpu.memory_space<vmem>>, vector<64x4xf32>
    %52 = vector.broadcast %33 : vector<64x1xf32> to vector<64x4xf32>
    %53 = arith.mulf %51, %52 : vector<64x4xf32>
    %c16_23 = arith.constant 16 : index
    %c0_24 = arith.constant 0 : index
    %54 = vector.load %arg8[%c16_23, %c0_24] : memref<96x4xf32, #tpu.memory_space<vmem>>, vector<64x4xf32>
    %c17 = arith.constant 17 : index
    %c0_25 = arith.constant 0 : index
    %55 = vector.load %arg8[%c17, %c0_25] : memref<96x4xf32, #tpu.memory_space<vmem>>, vector<64x4xf32>
    %56 = vector.broadcast %37 : vector<64x1xf32> to vector<64x4xf32>
    %57 = arith.mulf %55, %56 : vector<64x4xf32>
    %58 = tpu.concatenate %53, %54, %57 in 1 : vector<64x4xf32>, vector<64x4xf32>, vector<64x4xf32> -> vector<64x12xf32>
    %c1 = arith.constant 1 : index
    %c0_26 = arith.constant 0 : index
    %c0_27 = arith.constant 0 : index
    %59 = vector.load %arg4[%c1, %c0_26, %c0_27] : memref<3x12x4xf32, #tpu.memory_space<vmem>>, vector<1x12x4xf32>
    %60 = vector.shape_cast %59 : vector<1x12x4xf32> to vector<12x4xf32>
    %cst_28 = arith.constant dense<0.000000e+00> : vector<64x4xf32>
    %61 = tpu.matmul %58, %60, %cst_28 {dimension_numbers = #tpu.dot_dimension_numbers<[1], [0], [0], [1], [0, 0, 1, 1], [], []>} : vector<64x12xf32>, vector<12x4xf32>, vector<64x4xf32> -> vector<64x4xf32>
    %62 = arith.addf %50, %61 : vector<64x4xf32>
    %c23 = arith.constant 23 : index
    %c0_29 = arith.constant 0 : index
    %63 = vector.load %arg8[%c23, %c0_29] : memref<96x4xf32, #tpu.memory_space<vmem>>, vector<64x4xf32>
    %64 = vector.broadcast %33 : vector<64x1xf32> to vector<64x4xf32>
    %65 = arith.mulf %63, %64 : vector<64x4xf32>
    %c24 = arith.constant 24 : index
    %c0_30 = arith.constant 0 : index
    %66 = vector.load %arg8[%c24, %c0_30] : memref<96x4xf32, #tpu.memory_space<vmem>>, vector<64x4xf32>
    %c25 = arith.constant 25 : index
    %c0_31 = arith.constant 0 : index
    %67 = vector.load %arg8[%c25, %c0_31] : memref<96x4xf32, #tpu.memory_space<vmem>>, vector<64x4xf32>
    %68 = vector.broadcast %37 : vector<64x1xf32> to vector<64x4xf32>
    %69 = arith.mulf %67, %68 : vector<64x4xf32>
    %70 = tpu.concatenate %65, %66, %69 in 1 : vector<64x4xf32>, vector<64x4xf32>, vector<64x4xf32> -> vector<64x12xf32>
    %c2 = arith.constant 2 : index
    %c0_32 = arith.constant 0 : index
    %c0_33 = arith.constant 0 : index
    %71 = vector.load %arg4[%c2, %c0_32, %c0_33] : memref<3x12x4xf32, #tpu.memory_space<vmem>>, vector<1x12x4xf32>
    %72 = vector.shape_cast %71 : vector<1x12x4xf32> to vector<12x4xf32>
    %cst_34 = arith.constant dense<0.000000e+00> : vector<64x4xf32>
    %73 = tpu.matmul %70, %72, %cst_34 {dimension_numbers = #tpu.dot_dimension_numbers<[1], [0], [0], [1], [0, 0, 1, 1], [], []>} : vector<64x12xf32>, vector<12x4xf32>, vector<64x4xf32> -> vector<64x4xf32>
    %74 = arith.addf %62, %73 : vector<64x4xf32>
    %c0_35 = arith.constant 0 : index
    %c0_36 = arith.constant 0 : index
    %75 = vector.load %arg5[%c0_35, %c0_36] : memref<64x4xf32, #tpu.memory_space<vmem>>, vector<64x4xf32>
    tpu.vector_store %arg5[%c0_35, %c0_36], %74 {strides = array<i32>} : memref<64x4xf32, #tpu.memory_space<vmem>>, vector<64x4xf32>,
    %cst_37 = arith.constant dense<0.000000e+00> : vector<4xf32>
    %76 = vector.multi_reduction <add>, %74, %cst_37 [0] : vector<64x4xf32> to vector<4xf32>
    %77 = vector.shape_cast %76 : vector<4xf32> to vector<1x4xf32>
    %78 = vector.shape_cast %77 : vector<1x4xf32> to vector<1x1x4xf32>
    %79 = vector.shape_cast %78 : vector<1x1x4xf32> to vector<1x1x4xf32>
    %80 = vector.broadcast %79 : vector<1x1x4xf32> to vector<1x8x4xf32>
    %c0_38 = arith.constant 0 : index
    %c0_39 = arith.constant 0 : index
    %c0_40 = arith.constant 0 : index
    %81 = vector.load %arg6[%c0_38, %c0_39, %c0_40] : memref<1x8x4xf32, #tpu.memory_space<vmem>>, vector<1x8x4xf32>
    tpu.vector_store %arg6[%c0_38, %c0_39, %c0_40], %80 {strides = array<i32>} : memref<1x8x4xf32, #tpu.memory_space<vmem>>, vector<1x8x4xf32>,
    %82 = arith.mulf %74, %74 : vector<64x4xf32>
    %cst_41 = arith.constant dense<0.000000e+00> : vector<4xf32>
    %83 = vector.multi_reduction <add>, %82, %cst_41 [0] : vector<64x4xf32> to vector<4xf32>
    %84 = vector.shape_cast %83 : vector<4xf32> to vector<1x4xf32>
    %85 = vector.shape_cast %84 : vector<1x4xf32> to vector<1x1x4xf32>
    %86 = vector.shape_cast %85 : vector<1x1x4xf32> to vector<1x1x4xf32>
    %87 = vector.broadcast %86 : vector<1x1x4xf32> to vector<1x8x4xf32>
    %c0_42 = arith.constant 0 : index
    %c0_43 = arith.constant 0 : index
    %c0_44 = arith.constant 0 : index
    %88 = vector.load %arg7[%c0_42, %c0_43, %c0_44] : memref<1x8x4xf32, #tpu.memory_space<vmem>>, vector<1x8x4xf32>
    tpu.vector_store %arg7[%c0_42, %c0_43, %c0_44], %87 {strides = array<i32>} : memref<1x8x4xf32, #tpu.memory_space<vmem>>, vector<1x8x4xf32>,
    return
  }
  func.func @transform_0(%arg0: i32) -> (i32, i32) {
    %c0_i32 = arith.constant 0 : i32
    %c0_i32_0 = arith.constant 0 : i32
    return %arg0, %c0_i32 : i32, i32
  }
  func.func @transform_1(%arg0: i32) -> (i32, i32) {
    %c0_i32 = arith.constant 0 : i32
    %c0_i32_0 = arith.constant 0 : i32
    %c0_i32_1 = arith.constant 0 : i32
    return %c0_i32, %c0_i32_0 : i32, i32
  }
  func.func @transform_2(%arg0: i32) -> (i32, i32) {
    %c0_i32 = arith.constant 0 : i32
    %c0_i32_0 = arith.constant 0 : i32
    %c0_i32_1 = arith.constant 0 : i32
    return %c0_i32, %c0_i32_0 : i32, i32
  }
  func.func @transform_3(%arg0: i32) -> (i32, i32, i32) {
    %c0_i32 = arith.constant 0 : i32
    %c0_i32_0 = arith.constant 0 : i32
    %c0_i32_1 = arith.constant 0 : i32
    %c0_i32_2 = arith.constant 0 : i32
    return %c0_i32, %c0_i32_0, %c0_i32_1 : i32, i32, i32
  }
  func.func @transform_4(%arg0: i32) -> (i32, i32) {
    %c0_i32 = arith.constant 0 : i32
    %c0_i32_0 = arith.constant 0 : i32
    return %arg0, %c0_i32 : i32, i32
  }
  func.func @transform_5(%arg0: i32) -> (i32, i32, i32) {
    %c0_i32 = arith.constant 0 : i32
    %c0_i32_0 = arith.constant 0 : i32
    %c0_i32_1 = arith.constant 0 : i32
    return %arg0, %c0_i32, %c0_i32_0 : i32, i32, i32
  }
  func.func @transform_6(%arg0: i32) -> (i32, i32, i32) {
    %c0_i32 = arith.constant 0 : i32
    %c0_i32_0 = arith.constant 0 : i32
    %c0_i32_1 = arith.constant 0 : i32
    return %arg0, %c0_i32, %c0_i32_0 : i32, i32, i32
  }
}

module attributes {stable_mosaic.version = 11 : i64} {
  func.func @_bn_add_relu_kernel(%arg0: i32, %arg1: memref<128x16xf32, #tpu.memory_space<vmem>>, %arg2: memref<1x16xf32, #tpu.memory_space<vmem>>, %arg3: memref<1x16xf32, #tpu.memory_space<vmem>>, %arg4: memref<128x16xf32, #tpu.memory_space<vmem>>, %arg5: memref<128x16xf32, #tpu.memory_space<vmem>>) attributes {dimension_semantics = [#tpu.dimension_semantics<parallel>], iteration_bounds = array<i64: 1>, scalar_prefetch = 0 : i64, scratch_operands = 0 : i64, tpu.core_type = #tpu.core_type<tc>, window_params = [{transform_indices = @transform_0, window_bounds = array<i64: 128, 16>}, {pipeline_mode = #tpu.pipeline_mode<synchronous>, transform_indices = @transform_1, window_bounds = array<i64: 1, 16>}, {pipeline_mode = #tpu.pipeline_mode<synchronous>, transform_indices = @transform_2, window_bounds = array<i64: 1, 16>}, {transform_indices = @transform_3, window_bounds = array<i64: 128, 16>}, {transform_indices = @transform_4, window_bounds = array<i64: 128, 16>}]} {
    %c0 = arith.constant 0 : index
    %c0_0 = arith.constant 0 : index
    %0 = vector.load %arg1[%c0, %c0_0] : memref<128x16xf32, #tpu.memory_space<vmem>>, vector<128x16xf32>
    %c0_1 = arith.constant 0 : index
    %c0_2 = arith.constant 0 : index
    %1 = vector.load %arg2[%c0_1, %c0_2] : memref<1x16xf32, #tpu.memory_space<vmem>>, vector<1x16xf32>
    %2 = vector.broadcast %1 : vector<1x16xf32> to vector<128x16xf32>
    %3 = arith.mulf %0, %2 : vector<128x16xf32>
    %c0_3 = arith.constant 0 : index
    %c0_4 = arith.constant 0 : index
    %4 = vector.load %arg3[%c0_3, %c0_4] : memref<1x16xf32, #tpu.memory_space<vmem>>, vector<1x16xf32>
    %5 = vector.broadcast %4 : vector<1x16xf32> to vector<128x16xf32>
    %6 = arith.addf %3, %5 : vector<128x16xf32>
    %c0_5 = arith.constant 0 : index
    %c0_6 = arith.constant 0 : index
    %7 = vector.load %arg4[%c0_5, %c0_6] : memref<128x16xf32, #tpu.memory_space<vmem>>, vector<128x16xf32>
    %8 = arith.addf %6, %7 : vector<128x16xf32>
    %cst = arith.constant 0.000000e+00 : f32
    %9 = vector.broadcast %cst : f32 to vector<128x16xf32>
    %10 = arith.maximumf %8, %9 : vector<128x16xf32>
    %c0_7 = arith.constant 0 : index
    %c0_8 = arith.constant 0 : index
    %11 = vector.load %arg5[%c0_7, %c0_8] : memref<128x16xf32, #tpu.memory_space<vmem>>, vector<128x16xf32>
    tpu.vector_store %arg5[%c0_7, %c0_8], %10 {strides = array<i32>} : memref<128x16xf32, #tpu.memory_space<vmem>>, vector<128x16xf32>,
    return
  }
  func.func @transform_0(%arg0: i32) -> (i32, i32) {
    %c0_i32 = arith.constant 0 : i32
    %c0_i32_0 = arith.constant 0 : i32
    return %arg0, %c0_i32 : i32, i32
  }
  func.func @transform_1(%arg0: i32) -> (i32, i32) {
    %c0_i32 = arith.constant 0 : i32
    %c0_i32_0 = arith.constant 0 : i32
    %c0_i32_1 = arith.constant 0 : i32
    return %c0_i32, %c0_i32_0 : i32, i32
  }
  func.func @transform_2(%arg0: i32) -> (i32, i32) {
    %c0_i32 = arith.constant 0 : i32
    %c0_i32_0 = arith.constant 0 : i32
    %c0_i32_1 = arith.constant 0 : i32
    return %c0_i32, %c0_i32_0 : i32, i32
  }
  func.func @transform_3(%arg0: i32) -> (i32, i32) {
    %c0_i32 = arith.constant 0 : i32
    %c0_i32_0 = arith.constant 0 : i32
    return %arg0, %c0_i32 : i32, i32
  }
  func.func @transform_4(%arg0: i32) -> (i32, i32) {
    %c0_i32 = arith.constant 0 : i32
    %c0_i32_0 = arith.constant 0 : i32
    return %arg0, %c0_i32 : i32, i32
  }
}

module attributes {stable_mosaic.version = 11 : i64} {
  func.func @_bn_relu_conv1x1_stats_kernel(%arg0: i32, %arg1: memref<128x4xf32, #tpu.memory_space<vmem>>, %arg2: memref<1x4xf32, #tpu.memory_space<vmem>>, %arg3: memref<1x4xf32, #tpu.memory_space<vmem>>, %arg4: memref<4x16xf32, #tpu.memory_space<vmem>>, %arg5: memref<128x16xf32, #tpu.memory_space<vmem>>, %arg6: memref<1x8x16xf32, #tpu.memory_space<vmem>>, %arg7: memref<1x8x16xf32, #tpu.memory_space<vmem>>) attributes {dimension_semantics = [#tpu.dimension_semantics<parallel>], iteration_bounds = array<i64: 1>, scalar_prefetch = 0 : i64, scratch_operands = 0 : i64, tpu.core_type = #tpu.core_type<tc>, window_params = [{transform_indices = @transform_0, window_bounds = array<i64: 128, 4>}, {pipeline_mode = #tpu.pipeline_mode<synchronous>, transform_indices = @transform_1, window_bounds = array<i64: 1, 4>}, {pipeline_mode = #tpu.pipeline_mode<synchronous>, transform_indices = @transform_2, window_bounds = array<i64: 1, 4>}, {pipeline_mode = #tpu.pipeline_mode<synchronous>, transform_indices = @transform_3, window_bounds = array<i64: 4, 16>}, {transform_indices = @transform_4, window_bounds = array<i64: 128, 16>}, {transform_indices = @transform_5, window_bounds = array<i64: 1, 8, 16>}, {transform_indices = @transform_6, window_bounds = array<i64: 1, 8, 16>}]} {
    %c0 = arith.constant 0 : index
    %c0_0 = arith.constant 0 : index
    %0 = vector.load %arg1[%c0, %c0_0] : memref<128x4xf32, #tpu.memory_space<vmem>>, vector<128x4xf32>
    %c0_1 = arith.constant 0 : index
    %c0_2 = arith.constant 0 : index
    %1 = vector.load %arg2[%c0_1, %c0_2] : memref<1x4xf32, #tpu.memory_space<vmem>>, vector<1x4xf32>
    %2 = vector.broadcast %1 : vector<1x4xf32> to vector<128x4xf32>
    %3 = arith.mulf %0, %2 : vector<128x4xf32>
    %c0_3 = arith.constant 0 : index
    %c0_4 = arith.constant 0 : index
    %4 = vector.load %arg3[%c0_3, %c0_4] : memref<1x4xf32, #tpu.memory_space<vmem>>, vector<1x4xf32>
    %5 = vector.broadcast %4 : vector<1x4xf32> to vector<128x4xf32>
    %6 = arith.addf %3, %5 : vector<128x4xf32>
    %cst = arith.constant 0.000000e+00 : f32
    %7 = vector.broadcast %cst : f32 to vector<128x4xf32>
    %8 = arith.maximumf %6, %7 : vector<128x4xf32>
    %c0_5 = arith.constant 0 : index
    %c0_6 = arith.constant 0 : index
    %9 = vector.load %arg4[%c0_5, %c0_6] : memref<4x16xf32, #tpu.memory_space<vmem>>, vector<4x16xf32>
    %cst_7 = arith.constant dense<0.000000e+00> : vector<128x16xf32>
    %10 = tpu.matmul %8, %9, %cst_7 {dimension_numbers = #tpu.dot_dimension_numbers<[1], [0], [0], [1], [0, 0, 1, 1], [], []>} : vector<128x4xf32>, vector<4x16xf32>, vector<128x16xf32> -> vector<128x16xf32>
    %c0_8 = arith.constant 0 : index
    %c0_9 = arith.constant 0 : index
    %11 = vector.load %arg5[%c0_8, %c0_9] : memref<128x16xf32, #tpu.memory_space<vmem>>, vector<128x16xf32>
    tpu.vector_store %arg5[%c0_8, %c0_9], %10 {strides = array<i32>} : memref<128x16xf32, #tpu.memory_space<vmem>>, vector<128x16xf32>,
    %cst_10 = arith.constant dense<0.000000e+00> : vector<16xf32>
    %12 = vector.multi_reduction <add>, %10, %cst_10 [0] : vector<128x16xf32> to vector<16xf32>
    %13 = vector.shape_cast %12 : vector<16xf32> to vector<1x16xf32>
    %14 = vector.shape_cast %13 : vector<1x16xf32> to vector<1x1x16xf32>
    %15 = vector.shape_cast %14 : vector<1x1x16xf32> to vector<1x1x16xf32>
    %16 = vector.broadcast %15 : vector<1x1x16xf32> to vector<1x8x16xf32>
    %c0_11 = arith.constant 0 : index
    %c0_12 = arith.constant 0 : index
    %c0_13 = arith.constant 0 : index
    %17 = vector.load %arg6[%c0_11, %c0_12, %c0_13] : memref<1x8x16xf32, #tpu.memory_space<vmem>>, vector<1x8x16xf32>
    tpu.vector_store %arg6[%c0_11, %c0_12, %c0_13], %16 {strides = array<i32>} : memref<1x8x16xf32, #tpu.memory_space<vmem>>, vector<1x8x16xf32>,
    %18 = arith.mulf %10, %10 : vector<128x16xf32>
    %cst_14 = arith.constant dense<0.000000e+00> : vector<16xf32>
    %19 = vector.multi_reduction <add>, %18, %cst_14 [0] : vector<128x16xf32> to vector<16xf32>
    %20 = vector.shape_cast %19 : vector<16xf32> to vector<1x16xf32>
    %21 = vector.shape_cast %20 : vector<1x16xf32> to vector<1x1x16xf32>
    %22 = vector.shape_cast %21 : vector<1x1x16xf32> to vector<1x1x16xf32>
    %23 = vector.broadcast %22 : vector<1x1x16xf32> to vector<1x8x16xf32>
    %c0_15 = arith.constant 0 : index
    %c0_16 = arith.constant 0 : index
    %c0_17 = arith.constant 0 : index
    %24 = vector.load %arg7[%c0_15, %c0_16, %c0_17] : memref<1x8x16xf32, #tpu.memory_space<vmem>>, vector<1x8x16xf32>
    tpu.vector_store %arg7[%c0_15, %c0_16, %c0_17], %23 {strides = array<i32>} : memref<1x8x16xf32, #tpu.memory_space<vmem>>, vector<1x8x16xf32>,
    return
  }
  func.func @transform_0(%arg0: i32) -> (i32, i32) {
    %c0_i32 = arith.constant 0 : i32
    %c0_i32_0 = arith.constant 0 : i32
    return %arg0, %c0_i32 : i32, i32
  }
  func.func @transform_1(%arg0: i32) -> (i32, i32) {
    %c0_i32 = arith.constant 0 : i32
    %c0_i32_0 = arith.constant 0 : i32
    %c0_i32_1 = arith.constant 0 : i32
    return %c0_i32, %c0_i32_0 : i32, i32
  }
  func.func @transform_2(%arg0: i32) -> (i32, i32) {
    %c0_i32 = arith.constant 0 : i32
    %c0_i32_0 = arith.constant 0 : i32
    %c0_i32_1 = arith.constant 0 : i32
    return %c0_i32, %c0_i32_0 : i32, i32
  }
  func.func @transform_3(%arg0: i32) -> (i32, i32) {
    %c0_i32 = arith.constant 0 : i32
    %c0_i32_0 = arith.constant 0 : i32
    %c0_i32_1 = arith.constant 0 : i32
    return %c0_i32, %c0_i32_0 : i32, i32
  }
  func.func @transform_4(%arg0: i32) -> (i32, i32) {
    %c0_i32 = arith.constant 0 : i32
    %c0_i32_0 = arith.constant 0 : i32
    return %arg0, %c0_i32 : i32, i32
  }
  func.func @transform_5(%arg0: i32) -> (i32, i32, i32) {
    %c0_i32 = arith.constant 0 : i32
    %c0_i32_0 = arith.constant 0 : i32
    %c0_i32_1 = arith.constant 0 : i32
    return %arg0, %c0_i32, %c0_i32_0 : i32, i32, i32
  }
  func.func @transform_6(%arg0: i32) -> (i32, i32, i32) {
    %c0_i32 = arith.constant 0 : i32
    %c0_i32_0 = arith.constant 0 : i32
    %c0_i32_1 = arith.constant 0 : i32
    return %arg0, %c0_i32, %c0_i32_0 : i32, i32, i32
  }
}

</mosaic_0001>

<llo_original>
// kernel: block_forward.7
$region0: #{block_forward.7}
  #allocation0 [shape = 'u32[]', space=smem, size = 0x4, offset = 0x4, fixed_abs, tag = 'smem constant byte address 0x4 - core index']
  #allocation1 [shape = 'u32[144,128]{1,0:T(1,128)}', space=vmem, size = 0x12000, scoped, tag = 'internal scratch']
  %s0 = inlined_call_operand.vmem [shape: f32[128,16], index: 0, kind: input, shape index: {}]
  %s1 = inlined_call_operand.vmem [shape: f32[1,16], index: 1, kind: input, shape index: {}]
  %s2 = inlined_call_operand.vmem [shape: f32[1,16], index: 2, kind: input, shape index: {}]
  %s3 = inlined_call_operand.vmem [shape: f32[128,16], index: 3, kind: input, shape index: {}]
  %s4 = inlined_call_operand.hbm [shape: f32[128,16], index: 4, kind: output, shape index: {}]
  %s5 = sld [smem:[#allocation0]]
  $region26: #{block_forward.7} parent=0
    _
  %s7 = ssub.s32 1, %s5
  %s8 = scalar_select 0, %s7, %s5
  $region1: #{block_forward.7} parent=0
    #allocation2 [shape = 'u8[65536]{0}', space=vmem, size = 0x10000, scoped, tag = 'output window, operand 0, single buffered']
    #allocation3 [shape = 's32[1]{0}', space=sflag, size = 0x4, scoped, tag = 'scoped memory for block_forward.7']
    %9 = vsyncpa [#allocation3], 0
    // Predicated region
    $region2: #{block_forward.7} parent=1 // pred_check
      _
    $region3: #{block_forward.7} parent=1 // pred_check_branch
      %11 = sbr.rel (0) target = $region5
    $region4: #{block_forward.7} parent=1 // pred_region
      _
    $region5: #{block_forward.7} parent=1 // pred_fallthru
      _
    // Predicated region
    $region6: #{block_forward.7} parent=1 // pred_check
      _
    $region7: #{block_forward.7} parent=1 // pred_check_branch
      %13 = sbr.rel (0) target = $region9
    $region8: #{block_forward.7} parent=1 // pred_region
      _
    $region9: #{block_forward.7} parent=1 // pred_fallthru
      _
    // Predicated region
    $region10: #{block_forward.7} parent=1 // pred_check
      _
    $region11: #{block_forward.7} parent=1 // pred_check_branch
      %15 = sbr.rel (0) target = $region13
    $region12: #{block_forward.7} parent=1 // pred_region
      _
    $region13: #{block_forward.7} parent=1 // pred_fallthru
      _
    // Predicated region
    $region14: #{block_forward.7} parent=1 // pred_check
      _
    $region15: #{block_forward.7} parent=1 // pred_check_branch
      %17 = sbr.rel (0) target = $region17
    $region16: #{block_forward.7} parent=1 // pred_region
      _
    $region17: #{block_forward.7} parent=1 // pred_fallthru
      _
    %v18 = vld [vmem:[%s0] sm:$0xff]
    %v19 = vld [vmem:[%s0 + $0x8] sm:$0xff]
    %v20 = vld [vmem:[%s0 + $0x10] sm:$0xff]
    %v21 = vld [vmem:[%s0 + $0x18] sm:$0xff]
    %v22 = vld [vmem:[%s0 + $0x20] sm:$0xff]
    %v23 = vld [vmem:[%s0 + $0x28] sm:$0xff]
    %v24 = vld [vmem:[%s0 + $0x30] sm:$0xff]
    %v25 = vld [vmem:[%s0 + $0x38] sm:$0xff]
    %v26 = vld [vmem:[%s0 + $0x40] sm:$0xff]
    %v27 = vld [vmem:[%s0 + $0x48] sm:$0xff]
    %v28 = vld [vmem:[%s0 + $0x50] sm:$0xff]
    %v29 = vld [vmem:[%s0 + $0x58] sm:$0xff]
    %v30 = vld [vmem:[%s0 + $0x60] sm:$0xff]
    %v31 = vld [vmem:[%s0 + $0x68] sm:$0xff]
    %v32 = vld [vmem:[%s0 + $0x70] sm:$0xff]
    %v33 = vld [vmem:[%s0 + $0x78] sm:$0xff]
    %v34 = vld [vmem:[%s1] sm:$0x1]
    %v36 = vlaneseq
    %v37 = vshrl.u32 %v36, 7
    %v38 = vsub.s32 0, %v37
    %v39 = vrot.slane %v34, %v38
    %v41 = vmul.f32 %v18, %v39
    %v42 = vmul.f32 %v19, %v39
    %v43 = vmul.f32 %v20, %v39
    %v44 = vmul.f32 %v21, %v39
    %v45 = vmul.f32 %v22, %v39
    %v46 = vmul.f32 %v23, %v39
    %v47 = vmul.f32 %v24, %v39
    %v48 = vmul.f32 %v25, %v39
    %v49 = vmul.f32 %v26, %v39
    %v50 = vmul.f32 %v27, %v39
    %v51 = vmul.f32 %v28, %v39
    %v52 = vmul.f32 %v29, %v39
    %v53 = vmul.f32 %v30, %v39
    %v54 = vmul.f32 %v31, %v39
    %v55 = vmul.f32 %v32, %v39
    %v56 = vmul.f32 %v33, %v39
    %v57 = vld [vmem:[%s2] sm:$0x1]
    %v59 = vlaneseq
    %v60 = vshrl.u32 %v59, 7
    %v61 = vsub.s32 0, %v60
    %v62 = vrot.slane %v57, %v61
    %v64 = vadd.f32 %v41, %v62
    %v65 = vadd.f32 %v42, %v62
    %v66 = vadd.f32 %v43, %v62
    %v67 = vadd.f32 %v44, %v62
    %v68 = vadd.f32 %v45, %v62
    %v69 = vadd.f32 %v46, %v62
    %v70 = vadd.f32 %v47, %v62
    %v71 = vadd.f32 %v48, %v62
    %v72 = vadd.f32 %v49, %v62
    %v73 = vadd.f32 %v50, %v62
    %v74 = vadd.f32 %v51, %v62
    %v75 = vadd.f32 %v52, %v62
    %v76 = vadd.f32 %v53, %v62
    %v77 = vadd.f32 %v54, %v62
    %v78 = vadd.f32 %v55, %v62
    %v79 = vadd.f32 %v56, %v62
    %v80 = vld [vmem:[%s3] sm:$0xff]
    %v81 = vld [vmem:[%s3 + $0x8] sm:$0xff]
    %v82 = vld [vmem:[%s3 + $0x10] sm:$0xff]
    %v83 = vld [vmem:[%s3 + $0x18] sm:$0xff]
    %v84 = vld [vmem:[%s3 + $0x20] sm:$0xff]
    %v85 = vld [vmem:[%s3 + $0x28] sm:$0xff]
    %v86 = vld [vmem:[%s3 + $0x30] sm:$0xff]
    %v87 = vld [vmem:[%s3 + $0x38] sm:$0xff]
    %v88 = vld [vmem:[%s3 + $0x40] sm:$0xff]
    %v89 = vld [vmem:[%s3 + $0x48] sm:$0xff]
    %v90 = vld [vmem:[%s3 + $0x50] sm:$0xff]
    %v91 = vld [vmem:[%s3 + $0x58] sm:$0xff]
    %v92 = vld [vmem:[%s3 + $0x60] sm:$0xff]
    %v93 = vld [vmem:[%s3 + $0x68] sm:$0xff]
    %v94 = vld [vmem:[%s3 + $0x70] sm:$0xff]
    %v95 = vld [vmem:[%s3 + $0x78] sm:$0xff]
    %v96 = vadd.f32 %v64, %v80
    %v97 = vadd.f32 %v65, %v81
    %v98 = vadd.f32 %v66, %v82
    %v99 = vadd.f32 %v67, %v83
    %v100 = vadd.f32 %v68, %v84
    %v101 = vadd.f32 %v69, %v85
    %v102 = vadd.f32 %v70, %v86
    %v103 = vadd.f32 %v71, %v87
    %v104 = vadd.f32 %v72, %v88
    %v105 = vadd.f32 %v73, %v89
    %v106 = vadd.f32 %v74, %v90
    %v107 = vadd.f32 %v75, %v91
    %v108 = vadd.f32 %v76, %v92
    %v109 = vadd.f32 %v77, %v93
    %v110 = vadd.f32 %v78, %v94
    %v111 = vadd.f32 %v79, %v95
    %v112 = vmax.f32 %v96, 0.0
    %v113 = vmax.f32 %v97, 0.0
    %v114 = vmax.f32 %v98, 0.0
    %v115 = vmax.f32 %v99, 0.0
    %v116 = vmax.f32 %v100, 0.0
    %v117 = vmax.f32 %v101, 0.0
    %v118 = vmax.f32 %v102, 0.0
    %v119 = vmax.f32 %v103, 0.0
    %v120 = vmax.f32 %v104, 0.0
    %v121 = vmax.f32 %v105, 0.0
    %v122 = vmax.f32 %v106, 0.0
    %v123 = vmax.f32 %v107, 0.0
    %v124 = vmax.f32 %v108, 0.0
    %v125 = vmax.f32 %v109, 0.0
    %v126 = vmax.f32 %v110, 0.0
    %v127 = vmax.f32 %v111, 0.0
    %vm128 = vcmask 130048
    %129 = vst.msk [vmem:[#allocation2] sm:$0xff] %vm128, %v112
    %130 = vst.msk [vmem:[#allocation2 + $0x8] sm:$0xff] %vm128, %v113
    %131 = vst.msk [vmem:[#allocation2 + $0x10] sm:$0xff] %vm128, %v114
    %132 = vst.msk [vmem:[#allocation2 + $0x18] sm:$0xff] %vm128, %v115
    %133 = vst.msk [vmem:[#allocation2 + $0x20] sm:$0xff] %vm128, %v116
    %134 = vst.msk [vmem:[#allocation2 + $0x28] sm:$0xff] %vm128, %v117
    %135 = vst.msk [vmem:[#allocation2 + $0x30] sm:$0xff] %vm128, %v118
    %136 = vst.msk [vmem:[#allocation2 + $0x38] sm:$0xff] %vm128, %v119
    %137 = vst.msk [vmem:[#allocation2 + $0x40] sm:$0xff] %vm128, %v120
    %138 = vst.msk [vmem:[#allocation2 + $0x48] sm:$0xff] %vm128, %v121
    %139 = vst.msk [vmem:[#allocation2 + $0x50] sm:$0xff] %vm128, %v122
    %140 = vst.msk [vmem:[#allocation2 + $0x58] sm:$0xff] %vm128, %v123
    %141 = vst.msk [vmem:[#allocation2 + $0x60] sm:$0xff] %vm128, %v124
    %142 = vst.msk [vmem:[#allocation2 + $0x68] sm:$0xff] %vm128, %v125
    %143 = vst.msk [vmem:[#allocation2 + $0x70] sm:$0xff] %vm128, %v126
    %144 = vst.msk [vmem:[#allocation2 + $0x78] sm:$0xff] %vm128, %v127
    // Predicated region
    $region18: #{block_forward.7} parent=1 // pred_check
      _
    $region19: #{block_forward.7} parent=1 // pred_check_branch
      %146 = sbr.rel (0) target = $region21
    $region20: #{block_forward.7} parent=1 // pred_region
      %s148 = ssub.s32 2048, 2048
      %149 = vsyncadd [#allocation3], %s148
      %s150 = sshll.u32 [#allocation2], 4
      %s151 = int_to_ptr.vmem [resolvable:$true] %s150
      %156 = dma.vmem_to_hbm [thread:$0]  %s151, 2048, %s4, [#allocation3], 128, 128, 8
    $region21: #{block_forward.7} parent=1 // pred_fallthru
      _
    // Predicated region
    $region22: #{block_forward.7} parent=1 // pred_check
      _
    $region23: #{block_forward.7} parent=1 // pred_check_branch
      %158 = sbr.rel (0) target = $region25
    $region24: #{block_forward.7} parent=1 // pred_region
      %159 = dma.done [#allocation3], 2048
    $region25: #{block_forward.7} parent=1 // pred_fallthru
      _
    %160 = vsyncpa [#allocation3], 1

// kernel: block_forward.4
$region0: #{block_forward.4}
  #allocation0 [shape = 'u32[]', space=smem, size = 0x4, offset = 0x4, fixed_abs, tag = 'smem constant byte address 0x4 - core index']
  #allocation1 [shape = 'u32[144,128]{1,0:T(1,128)}', space=vmem, size = 0x12000, scoped, tag = 'internal scratch']
  %s0 = inlined_call_operand.vmem [shape: f32[128,16], index: 0, kind: input, shape index: {}]
  %s1 = inlined_call_operand.vmem [shape: f32[16,4], index: 1, kind: input, shape index: {}]
  %s2 = inlined_call_operand.vmem [shape: f32[128,4], index: 2, kind: output, shape index: {0}]
  %s3 = inlined_call_operand.vmem [shape: f32[1,8,4], index: 3, kind: output, shape index: {1}]
  %s4 = inlined_call_operand.vmem [shape: f32[1,8,4], index: 4, kind: output, shape index: {2}]
  %5 = xla_tuple %s2, %s3, %s4
  %s6 = sld [smem:[#allocation0]]
  $region34: #{block_forward.4} parent=0
    _
  %s8 = ssub.s32 1, %s6
  %s9 = scalar_select 0, %s8, %s6
  // Predicated region
  $region2: #{block_forward.4} parent=0 // pred_check
    _
  $region3: #{block_forward.4} parent=0 // pred_check_branch
    %11 = sbr.rel (0) target = $region5
  $region4: #{block_forward.4} parent=0 // pred_region
    _
  $region5: #{block_forward.4} parent=0 // pred_fallthru
    _
  // Predicated region
  $region6: #{block_forward.4} parent=0 // pred_check
    _
  $region7: #{block_forward.4} parent=0 // pred_check_branch
    %13 = sbr.rel (0) target = $region9
  $region8: #{block_forward.4} parent=0 // pred_region
    _
  $region9: #{block_forward.4} parent=0 // pred_fallthru
    _
  %v14 = vld [vmem:[%s0] sm:$0xff]
  %v15 = vld [vmem:[%s0 + $0x8] sm:$0xff]
  %v16 = vld [vmem:[%s0 + $0x10] sm:$0xff]
  %v17 = vld [vmem:[%s0 + $0x18] sm:$0xff]
  %v18 = vld [vmem:[%s0 + $0x20] sm:$0xff]
  %v19 = vld [vmem:[%s0 + $0x28] sm:$0xff]
  %v20 = vld [vmem:[%s0 + $0x30] sm:$0xff]
  %v21 = vld [vmem:[%s0 + $0x38] sm:$0xff]
  %v22 = vld [vmem:[%s0 + $0x40] sm:$0xff]
  %v23 = vld [vmem:[%s0 + $0x48] sm:$0xff]
  %v24 = vld [vmem:[%s0 + $0x50] sm:$0xff]
  %v25 = vld [vmem:[%s0 + $0x58] sm:$0xff]
  %v26 = vld [vmem:[%s0 + $0x60] sm:$0xff]
  %v27 = vld [vmem:[%s0 + $0x68] sm:$0xff]
  %v28 = vld [vmem:[%s0 + $0x70] sm:$0xff]
  %v29 = vld [vmem:[%s0 + $0x78] sm:$0xff]
  %v30 = vld [vmem:[%s1] sm:$0xff]
  %v31 = vld [vmem:[%s1 + $0x8] sm:$0xff]
  %vm32 = vcmask 130048
  %v34 = vsel %vm32, %v14, 0
  %v37 = vsel %vm32, %v15, 0
  %v40 = vsel %vm32, %v16, 0
  %v43 = vsel %vm32, %v17, 0
  %v46 = vsel %vm32, %v18, 0
  %v49 = vsel %vm32, %v19, 0
  %v52 = vsel %vm32, %v20, 0
  %v55 = vsel %vm32, %v21, 0
  %v58 = vsel %vm32, %v22, 0
  %v61 = vsel %vm32, %v23, 0
  %v64 = vsel %vm32, %v24, 0
  %v67 = vsel %vm32, %v25, 0
  %v70 = vsel %vm32, %v26, 0
  %v73 = vsel %vm32, %v27, 0
  %v76 = vsel %vm32, %v28, 0
  %v79 = vsel %vm32, %v29, 0
  %81 = vmatprep.subr.mxu0 0.0
  %82 = vmatpush1.msra.mxu0 0.0
  %83 = vmatprep.subr.mxu0 0.0
  %84 = vmatpush1.msra.mxu0 0.0
  %85 = vmatprep.subr.mxu0 0.0
  %86 = vmatpush1.msra.mxu0 0.0
  %87 = vmatprep.subr.mxu0 0.0
  %88 = vmatpush1.msra.mxu0 0.0
  %89 = vmatprep.subr.mxu0 0.0
  %90 = vmatpush1.msra.mxu0 0.0
  %91 = vmatprep.subr.mxu0 0.0
  %92 = vmatpush1.msra.mxu0 0.0
  %93 = vmatprep.subr.mxu0 0.0
  %94 = vmatpush1.msra.mxu0 0.0
  %95 = vmatprep.subr.mxu0 0.0
  %96 = vmatpush1.msra.mxu0 0.0
  %97 = vmatprep.subr.mxu0 0.0
  %98 = vmatpush1.msra.mxu0 0.0
  %99 = vmatprep.subr.mxu0 0.0
  %100 = vmatpush1.msra.mxu0 0.0
  %101 = vmatprep.subr.mxu0 0.0
  %102 = vmatpush1.msra.mxu0 0.0
  %103 = vmatprep.subr.mxu0 0.0
  %104 = vmatpush1.msra.mxu0 0.0
  %105 = vmatprep.subr.mxu0 0.0
  %106 = vmatpush1.msra.mxu0 0.0
  %107 = vmatprep.subr.mxu0 0.0
  %108 = vmatpush1.msra.mxu0 0.0
  %109 = vmatprep.subr.mxu0 0.0
  %110 = vmatpush1.msra.mxu0 %v31
  %111 = vmatprep.subr.mxu0 0.0
  %112 = vmatpush1.msra.mxu0 %v30
  %113 = vmatprep.subr.mxu0 0.0
  %114 = vmatpush2.msra.mxu0 0.0
  %115 = vmatprep.subr.mxu0 0.0
  %116 = vmatpush2.msra.mxu0 0.0
  %117 = vmatprep.subr.mxu0 0.0
  %118 = vmatpush2.msra.mxu0 0.0
  %119 = vmatprep.subr.mxu0 0.0
  %120 = vmatpush2.msra.mxu0 0.0
  %121 = vmatprep.subr.mxu0 0.0
  %122 = vmatpush2.msra.mxu0 0.0
  %123 = vmatprep.subr.mxu0 0.0
  %124 = vmatpush2.msra.mxu0 0.0
  %125 = vmatprep.subr.mxu0 0.0
  %126 = vmatpush2.msra.mxu0 0.0
  %127 = vmatprep.subr.mxu0 0.0
  %128 = vmatpush2.msra.mxu0 0.0
  %129 = vmatprep.subr.mxu0 0.0
  %130 = vmatpush2.msra.mxu0 0.0
  %131 = vmatprep.subr.mxu0 0.0
  %132 = vmatpush2.msra.mxu0 0.0
  %133 = vmatprep.subr.mxu0 0.0
  %134 = vmatpush2.msra.mxu0 0.0
  %135 = vmatprep.subr.mxu0 0.0
  %136 = vmatpush2.msra.mxu0 0.0
  %137 = vmatprep.subr.mxu0 0.0
  %138 = vmatpush2.msra.mxu0 0.0
  %139 = vmatprep.subr.mxu0 0.0
  %140 = vmatpush2.msra.mxu0 0.0
  %141 = vmatprep.subr.mxu0 0.0
  %142 = vmatpush2.msra.mxu0 0.0
  %143 = vmatprep.subr.mxu0 0.0
  %144 = vmatpush2.msra.mxu0 0.0
  %145 = vmatprep.mubr.f32.mxu0 0.0
  %146 = vmatmul.mubr.f32.gmra.mxu0 %v34
  %v147 = vpop.f32.mrf.mxu0
  %v148 = vadd.f32 0.0, %v147
  %v149 = vpop.f32.mrf.mxu0
  %150 = vmatprep.mubr.f32.mxu0 0.0
  %151 = vmatmul.mubr.f32.gmra.mxu0 %v37
  %v152 = vpop.f32.mrf.mxu0
  %v153 = vadd.f32 0.0, %v152
  %v154 = vpop.f32.mrf.mxu0
  %155 = vmatprep.mubr.f32.mxu0 0.0
  %156 = vmatmul.mubr.f32.gmra.mxu0 %v40
  %v157 = vpop.f32.mrf.mxu0
  %v158 = vadd.f32 0.0, %v157
  %v159 = vpop.f32.mrf.mxu0
  %160 = vmatprep.mubr.f32.mxu0 0.0
  %161 = vmatmul.mubr.f32.gmra.mxu0 %v43
  %v162 = vpop.f32.mrf.mxu0
  %v163 = vadd.f32 0.0, %v162
  %v164 = vpop.f32.mrf.mxu0
  %165 = vmatprep.mubr.f32.mxu0 0.0
  %166 = vmatmul.mubr.f32.gmra.mxu0 %v46
  %v167 = vpop.f32.mrf.mxu0
  %v168 = vadd.f32 0.0, %v167
  %v169 = vpop.f32.mrf.mxu0
  %170 = vmatprep.mubr.f32.mxu0 0.0
  %171 = vmatmul.mubr.f32.gmra.mxu0 %v49
  %v172 = vpop.f32.mrf.mxu0
  %v173 = vadd.f32 0.0, %v172
  %v174 = vpop.f32.mrf.mxu0
  %175 = vmatprep.mubr.f32.mxu0 0.0
  %176 = vmatmul.mubr.f32.gmra.mxu0 %v52
  %v177 = vpop.f32.mrf.mxu0
  %v178 = vadd.f32 0.0, %v177
  %v179 = vpop.f32.mrf.mxu0
  %180 = vmatprep.mubr.f32.mxu0 0.0
  %181 = vmatmul.mubr.f32.gmra.mxu0 %v55
  %v182 = vpop.f32.mrf.mxu0
  %v183 = vadd.f32 0.0, %v182
  %v184 = vpop.f32.mrf.mxu0
  %185 = vmatprep.mubr.f32.mxu0 0.0
  %186 = vmatmul.mubr.f32.gmra.mxu0 %v58
  %v187 = vpop.f32.mrf.mxu0
  %v188 = vadd.f32 0.0, %v187
  %v189 = vpop.f32.mrf.mxu0
  %190 = vmatprep.mubr.f32.mxu0 0.0
  %191 = vmatmul.mubr.f32.gmra.mxu0 %v61
  %v192 = vpop.f32.mrf.mxu0
  %v193 = vadd.f32 0.0, %v192
  %v194 = vpop.f32.mrf.mxu0
  %195 = vmatprep.mubr.f32.mxu0 0.0
  %196 = vmatmul.mubr.f32.gmra.mxu0 %v64
  %v197 = vpop.f32.mrf.mxu0
  %v198 = vadd.f32 0.0, %v197
  %v199 = vpop.f32.mrf.mxu0
  %200 = vmatprep.mubr.f32.mxu0 0.0
  %201 = vmatmul.mubr.f32.gmra.mxu0 %v67
  %v202 = vpop.f32.mrf.mxu0
  %v203 = vadd.f32 0.0, %v202
  %v204 = vpop.f32.mrf.mxu0
  %205 = vmatprep.mubr.f32.mxu0 0.0
  %206 = vmatmul.mubr.f32.gmra.mxu0 %v70
  %v207 = vpop.f32.mrf.mxu0
  %v208 = vadd.f32 0.0, %v207
  %v209 = vpop.f32.mrf.mxu0
  %210 = vmatprep.mubr.f32.mxu0 0.0
  %211 = vmatmul.mubr.f32.gmra.mxu0 %v73
  %v212 = vpop.f32.mrf.mxu0
  %v213 = vadd.f32 0.0, %v212
  %v214 = vpop.f32.mrf.mxu0
  %215 = vmatprep.mubr.f32.mxu0 0.0
  %216 = vmatmul.mubr.f32.gmra.mxu0 %v76
  %v217 = vpop.f32.mrf.mxu0
  %v218 = vadd.f32 0.0, %v217
  %v219 = vpop.f32.mrf.mxu0
  %220 = vmatprep.mubr.f32.mxu0 0.0
  %221 = vmatmul.mubr.f32.gmra.mxu0 %v79
  %v222 = vpop.f32.mrf.mxu0
  %v223 = vadd.f32 0.0, %v222
  %v224 = vpop.f32.mrf.mxu0
  %225 = vdwg.mxu0
  %vm226 = vcmask 31744
  %227 = vst.msk [vmem:[%s2] sm:$0xff] %vm226, %v148
  %228 = vst.msk [vmem:[%s2 + $0x8] sm:$0xff] %vm226, %v153
  %229 = vst.msk [vmem:[%s2 + $0x10] sm:$0xff] %vm226, %v158
  %230 = vst.msk [vmem:[%s2 + $0x18] sm:$0xff] %vm226, %v163
  %231 = vst.msk [vmem:[%s2 + $0x20] sm:$0xff] %vm226, %v168
  %232 = vst.msk [vmem:[%s2 + $0x28] sm:$0xff] %vm226, %v173
  %233 = vst.msk [vmem:[%s2 + $0x30] sm:$0xff] %vm226, %v178
  %234 = vst.msk [vmem:[%s2 + $0x38] sm:$0xff] %vm226, %v183
  %235 = vst.msk [vmem:[%s2 + $0x40] sm:$0xff] %vm226, %v188
  %236 = vst.msk [vmem:[%s2 + $0x48] sm:$0xff] %vm226, %v193
  %237 = vst.msk [vmem:[%s2 + $0x50] sm:$0xff] %vm226, %v198
  %238 = vst.msk [vmem:[%s2 + $0x58] sm:$0xff] %vm226, %v203
  %239 = vst.msk [vmem:[%s2 + $0x60] sm:$0xff] %vm226, %v208
  %240 = vst.msk [vmem:[%s2 + $0x68] sm:$0xff] %vm226, %v213
  %241 = vst.msk [vmem:[%s2 + $0x70] sm:$0xff] %vm226, %v218
  %242 = vst.msk [vmem:[%s2 + $0x78] sm:$0xff] %vm226, %v223
  %v243 = vsel %vm226, %v148, 0.0
  %v244 = vsel %vm226, %v153, 0.0
  %v245 = vadd.f32 %v243, %v244
  %v246 = vsel %vm226, %v158, 0.0
  %v247 = vadd.f32 %v245, %v246
  %v248 = vsel %vm226, %v163, 0.0
  %v249 = vadd.f32 %v247, %v248
  %v250 = vsel %vm226, %v168, 0.0
  %v251 = vadd.f32 %v249, %v250
  %v252 = vsel %vm226, %v173, 0.0
  %v253 = vadd.f32 %v251, %v252
  %v254 = vsel %vm226, %v178, 0.0
  %v255 = vadd.f32 %v253, %v254
  %v256 = vsel %vm226, %v183, 0.0
  %v257 = vadd.f32 %v255, %v256
  %v258 = vsel %vm226, %v188, 0.0
  %v259 = vadd.f32 %v257, %v258
  %v260 = vsel %vm226, %v193, 0.0
  %v261 = vadd.f32 %v259, %v260
  %v262 = vsel %vm226, %v198, 0.0
  %v263 = vadd.f32 %v261, %v262
  %v264 = vsel %vm226, %v203, 0.0
  %v265 = vadd.f32 %v263, %v264
  %v266 = vsel %vm226, %v208, 0.0
  %v267 = vadd.f32 %v265, %v266
  %v268 = vsel %vm226, %v213, 0.0
  %v269 = vadd.f32 %v267, %v268
  %v270 = vsel %vm226, %v218, 0.0
  %v271 = vadd.f32 %v269, %v270
  %v272 = vsel %vm226, %v223, 0.0
  %v273 = vadd.f32 %v271, %v272
  %v274 = vrot.slane %v273, 4
  %v275 = vadd.f32 %v273, %v274
  %v276 = vrot.slane %v275, 2
  %v277 = vadd.f32 %v275, %v276
  %v278 = vrot.slane %v277, 1
  %v279 = vadd.f32 %v277, %v278
  %280 = vst.msk [vmem:[%s3] sm:$0xff] %vm226, %v279
  %v281 = vmul.f32 %v148, %v148
  %v282 = vmul.f32 %v153, %v153
  %v283 = vmul.f32 %v158, %v158
  %v284 = vmul.f32 %v163, %v163
  %v285 = vmul.f32 %v168, %v168
  %v286 = vmul.f32 %v173, %v173
  %v287 = vmul.f32 %v178, %v178
  %v288 = vmul.f32 %v183, %v183
  %v289 = vmul.f32 %v188, %v188
  %v290 = vmul.f32 %v193, %v193
  %v291 = vmul.f32 %v198, %v198
  %v292 = vmul.f32 %v203, %v203
  %v293 = vmul.f32 %v208, %v208
  %v294 = vmul.f32 %v213, %v213
  %v295 = vmul.f32 %v218, %v218
  %v296 = vmul.f32 %v223, %v223
  %v297 = vsel %vm226, %v281, 0.0
  %v298 = vsel %vm226, %v282, 0.0
  %v299 = vadd.f32 %v297, %v298
  %v300 = vsel %vm226, %v283, 0.0
  %v301 = vadd.f32 %v299, %v300
  %v302 = vsel %vm226, %v284, 0.0
  %v303 = vadd.f32 %v301, %v302
  %v304 = vsel %vm226, %v285, 0.0
  %v305 = vadd.f32 %v303, %v304
  %v306 = vsel %vm226, %v286, 0.0
  %v307 = vadd.f32 %v305, %v306
  %v308 = vsel %vm226, %v287, 0.0
  %v309 = vadd.f32 %v307, %v308
  %v310 = vsel %vm226, %v288, 0.0
  %v311 = vadd.f32 %v309, %v310
  %v312 = vsel %vm226, %v289, 0.0
  %v313 = vadd.f32 %v311, %v312
  %v314 = vsel %vm226, %v290, 0.0
  %v315 = vadd.f32 %v313, %v314
  %v316 = vsel %vm226, %v291, 0.0
  %v317 = vadd.f32 %v315, %v316
  %v318 = vsel %vm226, %v292, 0.0
  %v319 = vadd.f32 %v317, %v318
  %v320 = vsel %vm226, %v293, 0.0
  %v321 = vadd.f32 %v319, %v320
  %v322 = vsel %vm226, %v294, 0.0
  %v323 = vadd.f32 %v321, %v322
  %v324 = vsel %vm226, %v295, 0.0
  %v325 = vadd.f32 %v323, %v324
  %v326 = vsel %vm226, %v296, 0.0
  %v327 = vadd.f32 %v325, %v326
  %v328 = vrot.slane %v327, 4
  %v329 = vadd.f32 %v327, %v328
  %v330 = vrot.slane %v329, 2
  %v331 = vadd.f32 %v329, %v330
  %v332 = vrot.slane %v331, 1
  %v333 = vadd.f32 %v331, %v332
  %334 = vst.msk [vmem:[%s4] sm:$0xff] %vm226, %v333
  // Predicated region
  $region10: #{block_forward.4} parent=0 // pred_check
    _
  $region11: #{block_forward.4} parent=0 // pred_check_branch
    %336 = sbr.rel (0) target = $region13
  $region12: #{block_forward.4} parent=0 // pred_region
    _
  $region13: #{block_forward.4} parent=0 // pred_fallthru
    _
  // Predicated region
  $region14: #{block_forward.4} parent=0 // pred_check
    _
  $region15: #{block_forward.4} parent=0 // pred_check_branch
    %338 = sbr.rel (0) target = $region17
  $region16: #{block_forward.4} parent=0 // pred_region
    _
  $region17: #{block_forward.4} parent=0 // pred_fallthru
    _
  // Predicated region
  $region18: #{block_forward.4} parent=0 // pred_check
    _
  $region19: #{block_forward.4} parent=0 // pred_check_branch
    %340 = sbr.rel (0) target = $region21
  $region20: #{block_forward.4} parent=0 // pred_region
    _
  $region21: #{block_forward.4} parent=0 // pred_fallthru
    _
  // Predicated region
  $region22: #{block_forward.4} parent=0 // pred_check
    _
  $region23: #{block_forward.4} parent=0 // pred_check_branch
    %342 = sbr.rel (0) target = $region25
  $region24: #{block_forward.4} parent=0 // pred_region
    _
  $region25: #{block_forward.4} parent=0 // pred_fallthru
    _
  // Predicated region
  $region26: #{block_forward.4} parent=0 // pred_check
    _
  $region27: #{block_forward.4} parent=0 // pred_check_branch
    %344 = sbr.rel (0) target = $region29
  $region28: #{block_forward.4} parent=0 // pred_region
    _
  $region29: #{block_forward.4} parent=0 // pred_fallthru
    _
  // Predicated region
  $region30: #{block_forward.4} parent=0 // pred_check
    _
  $region31: #{block_forward.4} parent=0 // pred_check_branch
    %346 = sbr.rel (0) target = $region33
  $region32: #{block_forward.4} parent=0 // pred_region
    _
  $region33: #{block_forward.4} parent=0 // pred_fallthru
    _

// kernel: block_forward.6
$region0: #{block_forward.6}
  #allocation0 [shape = 'u32[]', space=smem, size = 0x4, offset = 0x4, fixed_abs, tag = 'smem constant byte address 0x4 - core index']
  #allocation1 [shape = 'u32[144,128]{1,0:T(1,128)}', space=vmem, size = 0x12000, scoped, tag = 'internal scratch']
  %s0 = inlined_call_operand.vmem [shape: f32[128,4], index: 0, kind: input, shape index: {}]
  %s1 = inlined_call_operand.vmem [shape: f32[1,4], index: 1, kind: input, shape index: {}]
  %s2 = inlined_call_operand.vmem [shape: f32[1,4], index: 2, kind: input, shape index: {}]
  %s3 = inlined_call_operand.vmem [shape: f32[4,16], index: 3, kind: input, shape index: {}]
  %s4 = inlined_call_operand.vmem [shape: f32[128,16], index: 4, kind: output, shape index: {0}]
  %s5 = inlined_call_operand.vmem [shape: f32[1,8,16], index: 5, kind: output, shape index: {1}]
  %s6 = inlined_call_operand.vmem [shape: f32[1,8,16], index: 6, kind: output, shape index: {2}]
  %7 = xla_tuple %s4, %s5, %s6
  %s8 = sld [smem:[#allocation0]]
  $region42: #{block_forward.6} parent=0
    _
  %s10 = ssub.s32 1, %s8
  %s11 = scalar_select 0, %s10, %s8
  // Predicated region
  $region2: #{block_forward.6} parent=0 // pred_check
    _
  $region3: #{block_forward.6} parent=0 // pred_check_branch
    %13 = sbr.rel (0) target = $region5
  $region4: #{block_forward.6} parent=0 // pred_region
    _
  $region5: #{block_forward.6} parent=0 // pred_fallthru
    _
  // Predicated region
  $region6: #{block_forward.6} parent=0 // pred_check
    _
  $region7: #{block_forward.6} parent=0 // pred_check_branch
    %15 = sbr.rel (0) target = $region9
  $region8: #{block_forward.6} parent=0 // pred_region
    _
  $region9: #{block_forward.6} parent=0 // pred_fallthru
    _
  // Predicated region
  $region10: #{block_forward.6} parent=0 // pred_check
    _
  $region11: #{block_forward.6} parent=0 // pred_check_branch
    %17 = sbr.rel (0) target = $region13
  $region12: #{block_forward.6} parent=0 // pred_region
    _
  $region13: #{block_forward.6} parent=0 // pred_fallthru
    _
  // Predicated region
  $region14: #{block_forward.6} parent=0 // pred_check
    _
  $region15: #{block_forward.6} parent=0 // pred_check_branch
    %19 = sbr.rel (0) target = $region17
  $region16: #{block_forward.6} parent=0 // pred_region
    _
  $region17: #{block_forward.6} parent=0 // pred_fallthru
    _
  %v20 = vld [vmem:[%s0] sm:$0xff]
  %v21 = vld [vmem:[%s0 + $0x8] sm:$0xff]
  %v22 = vld [vmem:[%s0 + $0x10] sm:$0xff]
  %v23 = vld [vmem:[%s0 + $0x18] sm:$0xff]
  %v24 = vld [vmem:[%s0 + $0x20] sm:$0xff]
  %v25 = vld [vmem:[%s0 + $0x28] sm:$0xff]
  %v26 = vld [vmem:[%s0 + $0x30] sm:$0xff]
  %v27 = vld [vmem:[%s0 + $0x38] sm:$0xff]
  %v28 = vld [vmem:[%s0 + $0x40] sm:$0xff]
  %v29 = vld [vmem:[%s0 + $0x48] sm:$0xff]
  %v30 = vld [vmem:[%s0 + $0x50] sm:$0xff]
  %v31 = vld [vmem:[%s0 + $0x58] sm:$0xff]
  %v32 = vld [vmem:[%s0 + $0x60] sm:$0xff]
  %v33 = vld [vmem:[%s0 + $0x68] sm:$0xff]
  %v34 = vld [vmem:[%s0 + $0x70] sm:$0xff]
  %v35 = vld [vmem:[%s0 + $0x78] sm:$0xff]
  %v36 = vld [vmem:[%s1] sm:$0x1]
  %v38 = vlaneseq
  %v39 = vshrl.u32 %v38, 7
  %v40 = vsub.s32 0, %v39
  %v41 = vrot.slane %v36, %v40
  %v43 = vmul.f32 %v20, %v41
  %v44 = vmul.f32 %v21, %v41
  %v45 = vmul.f32 %v22, %v41
  %v46 = vmul.f32 %v23, %v41
  %v47 = vmul.f32 %v24, %v41
  %v48 = vmul.f32 %v25, %v41
  %v49 = vmul.f32 %v26, %v41
  %v50 = vmul.f32 %v27, %v41
  %v51 = vmul.f32 %v28, %v41
  %v52 = vmul.f32 %v29, %v41
  %v53 = vmul.f32 %v30, %v41
  %v54 = vmul.f32 %v31, %v41
  %v55 = vmul.f32 %v32, %v41
  %v56 = vmul.f32 %v33, %v41
  %v57 = vmul.f32 %v34, %v41
  %v58 = vmul.f32 %v35, %v41
  %v59 = vld [vmem:[%s2] sm:$0x1]
  %v61 = vlaneseq
  %v62 = vshrl.u32 %v61, 7
  %v63 = vsub.s32 0, %v62
  %v64 = vrot.slane %v59, %v63
  %v66 = vadd.f32 %v43, %v64
  %v67 = vadd.f32 %v44, %v64
  %v68 = vadd.f32 %v45, %v64
  %v69 = vadd.f32 %v46, %v64
  %v70 = vadd.f32 %v47, %v64
  %v71 = vadd.f32 %v48, %v64
  %v72 = vadd.f32 %v49, %v64
  %v73 = vadd.f32 %v50, %v64
  %v74 = vadd.f32 %v51, %v64
  %v75 = vadd.f32 %v52, %v64
  %v76 = vadd.f32 %v53, %v64
  %v77 = vadd.f32 %v54, %v64
  %v78 = vadd.f32 %v55, %v64
  %v79 = vadd.f32 %v56, %v64
  %v80 = vadd.f32 %v57, %v64
  %v81 = vadd.f32 %v58, %v64
  %v82 = vmax.f32 %v66, 0.0
  %v83 = vmax.f32 %v67, 0.0
  %v84 = vmax.f32 %v68, 0.0
  %v85 = vmax.f32 %v69, 0.0
  %v86 = vmax.f32 %v70, 0.0
  %v87 = vmax.f32 %v71, 0.0
  %v88 = vmax.f32 %v72, 0.0
  %v89 = vmax.f32 %v73, 0.0
  %v90 = vmax.f32 %v74, 0.0
  %v91 = vmax.f32 %v75, 0.0
  %v92 = vmax.f32 %v76, 0.0
  %v93 = vmax.f32 %v77, 0.0
  %v94 = vmax.f32 %v78, 0.0
  %v95 = vmax.f32 %v79, 0.0
  %v96 = vmax.f32 %v80, 0.0
  %v97 = vmax.f32 %v81, 0.0
  %v98 = vld [vmem:[%s3] sm:$0xf]
  %vm99 = vcmask 31744
  %v101 = vsel %vm99, %v82, 0
  %v104 = vsel %vm99, %v83, 0
  %v107 = vsel %vm99, %v84, 0
  %v110 = vsel %vm99, %v85, 0
  %v113 = vsel %vm99, %v86, 0
  %v116 = vsel %vm99, %v87, 0
  %v119 = vsel %vm99, %v88, 0
  %v122 = vsel %vm99, %v89, 0
  %v125 = vsel %vm99, %v90, 0
  %v128 = vsel %vm99, %v91, 0
  %v131 = vsel %vm99, %v92, 0
  %v134 = vsel %vm99, %v93, 0
  %v137 = vsel %vm99, %v94, 0
  %v140 = vsel %vm99, %v95, 0
  %v143 = vsel %vm99, %v96, 0
  %v146 = vsel %vm99, %v97, 0
  %vm148 = vcmask 1043456
  %v150 = vsel %vm148, %v98, 0
  %152 = vmatprep.subr.mxu0 0.0
  %153 = vmatpush1.msra.mxu0 0.0
  %154 = vmatprep.subr.mxu0 0.0
  %155 = vmatpush1.msra.mxu0 0.0
  %156 = vmatprep.subr.mxu0 0.0
  %157 = vmatpush1.msra.mxu0 0.0
  %158 = vmatprep.subr.mxu0 0.0
  %159 = vmatpush1.msra.mxu0 0.0
  %160 = vmatprep.subr.mxu0 0.0
  %161 = vmatpush1.msra.mxu0 0.0
  %162 = vmatprep.subr.mxu0 0.0
  %163 = vmatpush1.msra.mxu0 0.0
  %164 = vmatprep.subr.mxu0 0.0
  %165 = vmatpush1.msra.mxu0 0.0
  %166 = vmatprep.subr.mxu0 0.0
  %167 = vmatpush1.msra.mxu0 0.0
  %168 = vmatprep.subr.mxu0 0.0
  %169 = vmatpush1.msra.mxu0 0.0
  %170 = vmatprep.subr.mxu0 0.0
  %171 = vmatpush1.msra.mxu0 0.0
  %172 = vmatprep.subr.mxu0 0.0
  %173 = vmatpush1.msra.mxu0 0.0
  %174 = vmatprep.subr.mxu0 0.0
  %175 = vmatpush1.msra.mxu0 0.0
  %176 = vmatprep.subr.mxu0 0.0
  %177 = vmatpush1.msra.mxu0 0.0
  %178 = vmatprep.subr.mxu0 0.0
  %179 = vmatpush1.msra.mxu0 0.0
  %180 = vmatprep.subr.mxu0 0.0
  %181 = vmatpush1.msra.mxu0 0.0
  %182 = vmatprep.subr.mxu0 0.0
  %183 = vmatpush1.msra.mxu0 %v150
  %184 = vmatprep.subr.mxu0 0.0
  %185 = vmatpush2.msra.mxu0 0.0
  %186 = vmatprep.subr.mxu0 0.0
  %187 = vmatpush2.msra.mxu0 0.0
  %188 = vmatprep.subr.mxu0 0.0
  %189 = vmatpush2.msra.mxu0 0.0
  %190 = vmatprep.subr.mxu0 0.0
  %191 = vmatpush2.msra.mxu0 0.0
  %192 = vmatprep.subr.mxu0 0.0
  %193 = vmatpush2.msra.mxu0 0.0
  %194 = vmatprep.subr.mxu0 0.0
  %195 = vmatpush2.msra.mxu0 0.0
  %196 = vmatprep.subr.mxu0 0.0
  %197 = vmatpush2.msra.mxu0 0.0
  %198 = vmatprep.subr.mxu0 0.0
  %199 = vmatpush2.msra.mxu0 0.0
  %200 = vmatprep.subr.mxu0 0.0
  %201 = vmatpush2.msra.mxu0 0.0
  %202 = vmatprep.subr.mxu0 0.0
  %203 = vmatpush2.msra.mxu0 0.0
  %204 = vmatprep.subr.mxu0 0.0
  %205 = vmatpush2.msra.mxu0 0.0
  %206 = vmatprep.subr.mxu0 0.0
  %207 = vmatpush2.msra.mxu0 0.0
  %208 = vmatprep.subr.mxu0 0.0
  %209 = vmatpush2.msra.mxu0 0.0
  %210 = vmatprep.subr.mxu0 0.0
  %211 = vmatpush2.msra.mxu0 0.0
  %212 = vmatprep.subr.mxu0 0.0
  %213 = vmatpush2.msra.mxu0 0.0
  %214 = vmatprep.subr.mxu0 0.0
  %215 = vmatpush2.msra.mxu0 0.0
  %216 = vmatprep.mubr.f32.mxu0 0.0
  %217 = vmatmul.mubr.f32.gmra.mxu0 %v101
  %v218 = vpop.f32.mrf.mxu0
  %v219 = vadd.f32 0.0, %v218
  %v220 = vpop.f32.mrf.mxu0
  %221 = vmatprep.mubr.f32.mxu0 0.0
  %222 = vmatmul.mubr.f32.gmra.mxu0 %v104
  %v223 = vpop.f32.mrf.mxu0
  %v224 = vadd.f32 0.0, %v223
  %v225 = vpop.f32.mrf.mxu0
  %226 = vmatprep.mubr.f32.mxu0 0.0
  %227 = vmatmul.mubr.f32.gmra.mxu0 %v107
  %v228 = vpop.f32.mrf.mxu0
  %v229 = vadd.f32 0.0, %v228
  %v230 = vpop.f32.mrf.mxu0
  %231 = vmatprep.mubr.f32.mxu0 0.0
  %232 = vmatmul.mubr.f32.gmra.mxu0 %v110
  %v233 = vpop.f32.mrf.mxu0
  %v234 = vadd.f32 0.0, %v233
  %v235 = vpop.f32.mrf.mxu0
  %236 = vmatprep.mubr.f32.mxu0 0.0
  %237 = vmatmul.mubr.f32.gmra.mxu0 %v113
  %v238 = vpop.f32.mrf.mxu0
  %v239 = vadd.f32 0.0, %v238
  %v240 = vpop.f32.mrf.mxu0
  %241 = vmatprep.mubr.f32.mxu0 0.0
  %242 = vmatmul.mubr.f32.gmra.mxu0 %v116
  %v243 = vpop.f32.mrf.mxu0
  %v244 = vadd.f32 0.0, %v243
  %v245 = vpop.f32.mrf.mxu0
  %246 = vmatprep.mubr.f32.mxu0 0.0
  %247 = vmatmul.mubr.f32.gmra.mxu0 %v119
  %v248 = vpop.f32.mrf.mxu0
  %v249 = vadd.f32 0.0, %v248
  %v250 = vpop.f32.mrf.mxu0
  %251 = vmatprep.mubr.f32.mxu0 0.0
  %252 = vmatmul.mubr.f32.gmra.mxu0 %v122
  %v253 = vpop.f32.mrf.mxu0
  %v254 = vadd.f32 0.0, %v253
  %v255 = vpop.f32.mrf.mxu0
  %256 = vmatprep.mubr.f32.mxu0 0.0
  %257 = vmatmul.mubr.f32.gmra.mxu0 %v125
  %v258 = vpop.f32.mrf.mxu0
  %v259 = vadd.f32 0.0, %v258
  %v260 = vpop.f32.mrf.mxu0
  %261 = vmatprep.mubr.f32.mxu0 0.0
  %262 = vmatmul.mubr.f32.gmra.mxu0 %v128
  %v263 = vpop.f32.mrf.mxu0
  %v264 = vadd.f32 0.0, %v263
  %v265 = vpop.f32.mrf.mxu0
  %266 = vmatprep.mubr.f32.mxu0 0.0
  %267 = vmatmul.mubr.f32.gmra.mxu0 %v131
  %v268 = vpop.f32.mrf.mxu0
  %v269 = vadd.f32 0.0, %v268
  %v270 = vpop.f32.mrf.mxu0
  %271 = vmatprep.mubr.f32.mxu0 0.0
  %272 = vmatmul.mubr.f32.gmra.mxu0 %v134
  %v273 = vpop.f32.mrf.mxu0
  %v274 = vadd.f32 0.0, %v273
  %v275 = vpop.f32.mrf.mxu0
  %276 = vmatprep.mubr.f32.mxu0 0.0
  %277 = vmatmul.mubr.f32.gmra.mxu0 %v137
  %v278 = vpop.f32.mrf.mxu0
  %v279 = vadd.f32 0.0, %v278
  %v280 = vpop.f32.mrf.mxu0
  %281 = vmatprep.mubr.f32.mxu0 0.0
  %282 = vmatmul.mubr.f32.gmra.mxu0 %v140
  %v283 = vpop.f32.mrf.mxu0
  %v284 = vadd.f32 0.0, %v283
  %v285 = vpop.f32.mrf.mxu0
  %286 = vmatprep.mubr.f32.mxu0 0.0
  %287 = vmatmul.mubr.f32.gmra.mxu0 %v143
  %v288 = vpop.f32.mrf.mxu0
  %v289 = vadd.f32 0.0, %v288
  %v290 = vpop.f32.mrf.mxu0
  %291 = vmatprep.mubr.f32.mxu0 0.0
  %292 = vmatmul.mubr.f32.gmra.mxu0 %v146
  %v293 = vpop.f32.mrf.mxu0
  %v294 = vadd.f32 0.0, %v293
  %v295 = vpop.f32.mrf.mxu0
  %296 = vdwg.mxu0
  %vm297 = vcmask 130048
  %298 = vst.msk [vmem:[%s4] sm:$0xff] %vm297, %v219
  %299 = vst.msk [vmem:[%s4 + $0x8] sm:$0xff] %vm297, %v224
  %300 = vst.msk [vmem:[%s4 + $0x10] sm:$0xff] %vm297, %v229
  %301 = vst.msk [vmem:[%s4 + $0x18] sm:$0xff] %vm297, %v234
  %302 = vst.msk [vmem:[%s4 + $0x20] sm:$0xff] %vm297, %v239
  %303 = vst.msk [vmem:[%s4 + $0x28] sm:$0xff] %vm297, %v244
  %304 = vst.msk [vmem:[%s4 + $0x30] sm:$0xff] %vm297, %v249
  %305 = vst.msk [vmem:[%s4 + $0x38] sm:$0xff] %vm297, %v254
  %306 = vst.msk [vmem:[%s4 + $0x40] sm:$0xff] %vm297, %v259
  %307 = vst.msk [vmem:[%s4 + $0x48] sm:$0xff] %vm297, %v264
  %308 = vst.msk [vmem:[%s4 + $0x50] sm:$0xff] %vm297, %v269
  %309 = vst.msk [vmem:[%s4 + $0x58] sm:$0xff] %vm297, %v274
  %310 = vst.msk [vmem:[%s4 + $0x60] sm:$0xff] %vm297, %v279
  %311 = vst.msk [vmem:[%s4 + $0x68] sm:$0xff] %vm297, %v284
  %312 = vst.msk [vmem:[%s4 + $0x70] sm:$0xff] %vm297, %v289
  %313 = vst.msk [vmem:[%s4 + $0x78] sm:$0xff] %vm297, %v294
  %v314 = vsel %vm297, %v219, 0.0
  %v315 = vsel %vm297, %v224, 0.0
  %v316 = vadd.f32 %v314, %v315
  %v317 = vsel %vm297, %v229, 0.0
  %v318 = vadd.f32 %v316, %v317
  %v319 = vsel %vm297, %v234, 0.0
  %v320 = vadd.f32 %v318, %v319
  %v321 = vsel %vm297, %v239, 0.0
  %v322 = vadd.f32 %v320, %v321
  %v323 = vsel %vm297, %v244, 0.0
  %v324 = vadd.f32 %v322, %v323
  %v325 = vsel %vm297, %v249, 0.0
  %v326 = vadd.f32 %v324, %v325
  %v327 = vsel %vm297, %v254, 0.0
  %v328 = vadd.f32 %v326, %v327
  %v329 = vsel %vm297, %v259, 0.0
  %v330 = vadd.f32 %v328, %v329
  %v331 = vsel %vm297, %v264, 0.0
  %v332 = vadd.f32 %v330, %v331
  %v333 = vsel %vm297, %v269, 0.0
  %v334 = vadd.f32 %v332, %v333
  %v335 = vsel %vm297, %v274, 0.0
  %v336 = vadd.f32 %v334, %v335
  %v337 = vsel %vm297, %v279, 0.0
  %v338 = vadd.f32 %v336, %v337
  %v339 = vsel %vm297, %v284, 0.0
  %v340 = vadd.f32 %v338, %v339
  %v341 = vsel %vm297, %v289, 0.0
  %v342 = vadd.f32 %v340, %v341
  %v343 = vsel %vm297, %v294, 0.0
  %v344 = vadd.f32 %v342, %v343
  %v345 = vrot.slane %v344, 4
  %v346 = vadd.f32 %v344, %v345
  %v347 = vrot.slane %v346, 2
  %v348 = vadd.f32 %v346, %v347
  %v349 = vrot.slane %v348, 1
  %v350 = vadd.f32 %v348, %v349
  %351 = vst.msk [vmem:[%s5] sm:$0xff] %vm297, %v350
  %v352 = vmul.f32 %v219, %v219
  %v353 = vmul.f32 %v224, %v224
  %v354 = vmul.f32 %v229, %v229
  %v355 = vmul.f32 %v234, %v234
  %v356 = vmul.f32 %v239, %v239
  %v357 = vmul.f32 %v244, %v244
  %v358 = vmul.f32 %v249, %v249
  %v359 = vmul.f32 %v254, %v254
  %v360 = vmul.f32 %v259, %v259
  %v361 = vmul.f32 %v264, %v264
  %v362 = vmul.f32 %v269, %v269
  %v363 = vmul.f32 %v274, %v274
  %v364 = vmul.f32 %v279, %v279
  %v365 = vmul.f32 %v284, %v284
  %v366 = vmul.f32 %v289, %v289
  %v367 = vmul.f32 %v294, %v294
  %v368 = vsel %vm297, %v352, 0.0
  %v369 = vsel %vm297, %v353, 0.0
  %v370 = vadd.f32 %v368, %v369
  %v371 = vsel %vm297, %v354, 0.0
  %v372 = vadd.f32 %v370, %v371
  %v373 = vsel %vm297, %v355, 0.0
  %v374 = vadd.f32 %v372, %v373
  %v375 = vsel %vm297, %v356, 0.0
  %v376 = vadd.f32 %v374, %v375
  %v377 = vsel %vm297, %v357, 0.0
  %v378 = vadd.f32 %v376, %v377
  %v379 = vsel %vm297, %v358, 0.0
  %v380 = vadd.f32 %v378, %v379
  %v381 = vsel %vm297, %v359, 0.0
  %v382 = vadd.f32 %v380, %v381
  %v383 = vsel %vm297, %v360, 0.0
  %v384 = vadd.f32 %v382, %v383
  %v385 = vsel %vm297, %v361, 0.0
  %v386 = vadd.f32 %v384, %v385
  %v387 = vsel %vm297, %v362, 0.0
  %v388 = vadd.f32 %v386, %v387
  %v389 = vsel %vm297, %v363, 0.0
  %v390 = vadd.f32 %v388, %v389
  %v391 = vsel %vm297, %v364, 0.0
  %v392 = vadd.f32 %v390, %v391
  %v393 = vsel %vm297, %v365, 0.0
  %v394 = vadd.f32 %v392, %v393
  %v395 = vsel %vm297, %v366, 0.0
  %v396 = vadd.f32 %v394, %v395
  %v397 = vsel %vm297, %v367, 0.0
  %v398 = vadd.f32 %v396, %v397
  %v399 = vrot.slane %v398, 4
  %v400 = vadd.f32 %v398, %v399
  %v401 = vrot.slane %v400, 2
  %v402 = vadd.f32 %v400, %v401
  %v403 = vrot.slane %v402, 1
  %v404 = vadd.f32 %v402, %v403
  %405 = vst.msk [vmem:[%s6] sm:$0xff] %vm297, %v404
  // Predicated region
  $region18: #{block_forward.6} parent=0 // pred_check
    _
  $region19: #{block_forward.6} parent=0 // pred_check_branch
    %407 = sbr.rel (0) target = $region21
  $region20: #{block_forward.6} parent=0 // pred_region
    _
  $region21: #{block_forward.6} parent=0 // pred_fallthru
    _
  // Predicated region
  $region22: #{block_forward.6} parent=0 // pred_check
    _
  $region23: #{block_forward.6} parent=0 // pred_check_branch
    %409 = sbr.rel (0) target = $region25
  $region24: #{block_forward.6} parent=0 // pred_region
    _
  $region25: #{block_forward.6} parent=0 // pred_fallthru
    _
  // Predicated region
  $region26: #{block_forward.6} parent=0 // pred_check
    _
  $region27: #{block_forward.6} parent=0 // pred_check_branch
    %411 = sbr.rel (0) target = $region29
  $region28: #{block_forward.6} parent=0 // pred_region
    _
  $region29: #{block_forward.6} parent=0 // pred_fallthru
    _
  // Predicated region
  $region30: #{block_forward.6} parent=0 // pred_check
    _
  $region31: #{block_forward.6} parent=0 // pred_check_branch
    %413 = sbr.rel (0) target = $region33
  $region32: #{block_forward.6} parent=0 // pred_region
    _
  $region33: #{block_forward.6} parent=0 // pred_fallthru
    _
  // Predicated region
  $region34: #{block_forward.6} parent=0 // pred_check
    _
  $region35: #{block_forward.6} parent=0 // pred_check_branch
    %415 = sbr.rel (0) target = $region37
  $region36: #{block_forward.6} parent=0 // pred_region
    _
  $region37: #{block_forward.6} parent=0 // pred_fallthru
    _
  // Predicated region
  $region38: #{block_forward.6} parent=0 // pred_check
    _
  $region39: #{block_forward.6} parent=0 // pred_check_branch
    %417 = sbr.rel (0) target = $region41
  $region40: #{block_forward.6} parent=0 // pred_region
    _
  $region41: #{block_forward.6} parent=0 // pred_fallthru
    _

// kernel: block_forward.5
$region0: #{block_forward.5}
  #allocation0 [shape = 'u32[]', space=smem, size = 0x4, offset = 0x4, fixed_abs, tag = 'smem constant byte address 0x4 - core index']
  #allocation1 [shape = 'u32[144,128]{1,0:T(1,128)}', space=vmem, size = 0x12000, scoped, tag = 'internal scratch']
  #allocation2 [shape = 'f32[96,4]{1,0:T(8,128)}', space=vmem, size = 0xc000, scoped, tag = 'scratch operand']
  %s0 = inlined_call_operand.vmem [shape: f32[128,4], index: 0, kind: input, shape index: {}]
  %s1 = inlined_call_operand.vmem [shape: f32[1,4], index: 1, kind: input, shape index: {}]
  %s2 = inlined_call_operand.vmem [shape: f32[1,4], index: 2, kind: input, shape index: {}]
  %s3 = inlined_call_operand.vmem [shape: f32[3,12,4], index: 3, kind: input, shape index: {}]
  %s4 = inlined_call_operand.vmem [shape: f32[128,4], index: 4, kind: output, shape index: {0}]
  %s5 = inlined_call_operand.vmem [shape: f32[2,8,4], index: 5, kind: output, shape index: {1}]
  %s6 = inlined_call_operand.vmem [shape: f32[2,8,4], index: 6, kind: output, shape index: {2}]
  %7 = xla_tuple %s4, %s5, %s6
  %s8 = sld [smem:[#allocation0]]
  $region65: #{block_forward.5} parent=0
    _
  %s10 = ssub.s32 1, %s8
  %s11 = scalar_select 0, %s10, %s8
  loop: start=0, step=1, limit=4
  $region2: #{block_forward.5} parent=0 // loop_pre_header
    _
  $region3: #{block_forward.5} parent=0 // loop_header
    %s13 = sphi 0, %s17
    %p14 = scmp.ge.s32.totalorder %s13, 4
    %s23 = sphi 0, %s25
    %s26 = sphi 0, %s23
    %s27 = sphi 0, %s26
    %s43 = sphi 0, %s27
    %s47 = sphi 0, %s47
    %s49 = sphi 0, %s47
    %s50 = sphi 0, %s49
    %s64 = sphi 0, %s50
    %s68 = sphi 0, %s68
    %s70 = sphi 0, %s68
    %s71 = sphi 0, %s70
    %s85 = sphi 0, %s71
    %s89 = sphi 0, %s89
    %s91 = sphi 0, %s89
    %s92 = sphi 0, %s91
    %s106 = sphi 0, %s92
    %s112 = sphi 0, %s114
    %s115 = sphi 0, %s112
    %s116 = sphi 0, %s115
    %s132 = sphi 0, %s116
    %s138 = sphi 0, %s140
    %s141 = sphi 0, %s138
    %s142 = sphi 0, %s141
    %s158 = sphi 0, %s142
    %s164 = sphi 0, %s166
    %s167 = sphi 0, %s164
    %s168 = sphi 0, %s167
    %s184 = sphi 0, %s168
  $region4: #{block_forward.5} parent=0 // loop_header_branch
    %16 = sbr.rel (%p14) target = $region8
  $region5: #{block_forward.5} parent=0 // loop_body
    %s18 = ssub.s32 %s13, 1
    %s19 = ssub.s32 %s13, 2
    %s20 = sadd.s32 %s13, 1
    %s21 = ssub.s32 %s13, %s20
    %p22 = scmp.eq.s32.totalorder %s21, 0
    %s24 = sadd.s32 %s23, 1
    %s25 = scalar_select %p22, %s23, %s24
    %p28 = pneg %p22
    %p29 = scmp.eq.s32.totalorder %s13, 1
    %p30 = por %p28, %p29
    %p31 = scmp.ne.s32.totalorder %s23, %s26
    %p32 = scmp.eq.s32.totalorder %s13, 0
    %p33 = por %p31, %p32
    %p34 = scmp.ne.s32.totalorder %s23, %s26
    %p35 = scmp.eq.s32.totalorder %s18, 1
    %p36 = por %p34, %p35
    %p37 = scmp.ne.s32.totalorder %s26, %s27
    %p38 = scmp.eq.s32.totalorder %s18, 0
    %p39 = por %p37, %p38
    %p40 = scmp.ne.s32.totalorder %s26, %s27
    %p41 = scmp.eq.s32.totalorder %s19, 1
    %p42 = por %p40, %p41
    %p44 = scmp.ne.s32.totalorder %s27, %s43
    %p45 = scmp.eq.s32.totalorder %s19, 0
    %p46 = por %p44, %p45
    %s48 = sadd.s32 %s47, 1
    %p51 = scmp.eq.s32.totalorder %s13, 1
    %p52 = scmp.ne.s32.totalorder %s47, %s49
    %p53 = scmp.eq.s32.totalorder %s13, 0
    %p54 = por %p52, %p53
    %p55 = scmp.ne.s32.totalorder %s47, %s49
    %p56 = scmp.eq.s32.totalorder %s18, 1
    %p57 = por %p55, %p56
    %p58 = scmp.ne.s32.totalorder %s49, %s50
    %p59 = scmp.eq.s32.totalorder %s18, 0
    %p60 = por %p58, %p59
    %p61 = scmp.ne.s32.totalorder %s49, %s50
    %p62 = scmp.eq.s32.totalorder %s19, 1
    %p63 = por %p61, %p62
    %p65 = scmp.ne.s32.totalorder %s50, %s64
    %p66 = scmp.eq.s32.totalorder %s19, 0
    %p67 = por %p65, %p66
    %s69 = sadd.s32 %s68, 1
    %p72 = scmp.eq.s32.totalorder %s13, 1
    %p73 = scmp.ne.s32.totalorder %s68, %s70
    %p74 = scmp.eq.s32.totalorder %s13, 0
    %p75 = por %p73, %p74
    %p76 = scmp.ne.s32.totalorder %s68, %s70
    %p77 = scmp.eq.s32.totalorder %s18, 1
    %p78 = por %p76, %p77
    %p79 = scmp.ne.s32.totalorder %s70, %s71
    %p80 = scmp.eq.s32.totalorder %s18, 0
    %p81 = por %p79, %p80
    %p82 = scmp.ne.s32.totalorder %s70, %s71
    %p83 = scmp.eq.s32.totalorder %s19, 1
    %p84 = por %p82, %p83
    %p86 = scmp.ne.s32.totalorder %s71, %s85
    %p87 = scmp.eq.s32.totalorder %s19, 0
    %p88 = por %p86, %p87
    %s90 = sadd.s32 %s89, 1
    %p93 = scmp.eq.s32.totalorder %s13, 1
    %p94 = scmp.ne.s32.totalorder %s89, %s91
    %p95 = scmp.eq.s32.totalorder %s13, 0
    %p96 = por %p94, %p95
    %p97 = scmp.ne.s32.totalorder %s89, %s91
    %p98 = scmp.eq.s32.totalorder %s18, 1
    %p99 = por %p97, %p98
    %p100 = scmp.ne.s32.totalorder %s91, %s92
    %p101 = scmp.eq.s32.totalorder %s18, 0
    %p102 = por %p100, %p101
    %p103 = scmp.ne.s32.totalorder %s91, %s92
    %p104 = scmp.eq.s32.totalorder %s19, 1
    %p105 = por %p103, %p104
    %p107 = scmp.ne.s32.totalorder %s92, %s106
    %p108 = scmp.eq.s32.totalorder %s19, 0
    %p109 = por %p107, %p108
    %s110 = ssub.s32 %s13, %s20
    %p111 = scmp.eq.s32.totalorder %s110, 0
    %s113 = sadd.s32 %s112, 1
    %s114 = scalar_select %p111, %s112, %s113
    %p117 = pneg %p111
    %p118 = scmp.eq.s32.totalorder %s13, 1
    %p119 = por %p117, %p118
    %p120 = scmp.ne.s32.totalorder %s112, %s115
    %p121 = scmp.eq.s32.totalorder %s13, 0
    %p122 = por %p120, %p121
    %p123 = scmp.ne.s32.totalorder %s112, %s115
    %p124 = scmp.eq.s32.totalorder %s18, 1
    %p125 = por %p123, %p124
    %p126 = scmp.ne.s32.totalorder %s115, %s116
    %p127 = scmp.eq.s32.totalorder %s18, 0
    %p128 = por %p126, %p127
    %p129 = scmp.ne.s32.totalorder %s115, %s116
    %p130 = scmp.eq.s32.totalorder %s19, 1
    %p131 = por %p129, %p130
    %p133 = scmp.ne.s32.totalorder %s116, %s132
    %p134 = scmp.eq.s32.totalorder %s19, 0
    %p135 = por %p133, %p134
    %s136 = ssub.s32 %s13, %s20
    %p137 = scmp.eq.s32.totalorder %s136, 0
    %s139 = sadd.s32 %s138, 1
    %s140 = scalar_select %p137, %s138, %s139
    %p143 = pneg %p137
    %p144 = scmp.eq.s32.totalorder %s13, 1
    %p145 = por %p143, %p144
    %p146 = scmp.ne.s32.totalorder %s138, %s141
    %p147 = scmp.eq.s32.totalorder %s13, 0
    %p148 = por %p146, %p147
    %p149 = scmp.ne.s32.totalorder %s138, %s141
    %p150 = scmp.eq.s32.totalorder %s18, 1
    %p151 = por %p149, %p150
    %p152 = scmp.ne.s32.totalorder %s141, %s142
    %p153 = scmp.eq.s32.totalorder %s18, 0
    %p154 = por %p152, %p153
    %p155 = scmp.ne.s32.totalorder %s141, %s142
    %p156 = scmp.eq.s32.totalorder %s19, 1
    %p157 = por %p155, %p156
    %p159 = scmp.ne.s32.totalorder %s142, %s158
    %p160 = scmp.eq.s32.totalorder %s19, 0
    %p161 = por %p159, %p160
    %s162 = ssub.s32 %s13, %s20
    %p163 = scmp.eq.s32.totalorder %s162, 0
    %s165 = sadd.s32 %s164, 1
    %s166 = scalar_select %p163, %s164, %s165
    %p169 = pneg %p163
    %p170 = scmp.eq.s32.totalorder %s13, 1
    %p171 = por %p169, %p170
    %p172 = scmp.ne.s32.totalorder %s164, %s167
    %p173 = scmp.eq.s32.totalorder %s13, 0
    %p174 = por %p172, %p173
    %p175 = scmp.ne.s32.totalorder %s164, %s167
    %p176 = scmp.eq.s32.totalorder %s18, 1
    %p177 = por %p175, %p176
    %p178 = scmp.ne.s32.totalorder %s167, %s168
    %p179 = scmp.eq.s32.totalorder %s18, 0
    %p180 = por %p178, %p179
    %p181 = scmp.ne.s32.totalorder %s167, %s168
    %p182 = scmp.eq.s32.totalorder %s19, 1
    %p183 = por %p181, %p182
    %p185 = scmp.ne.s32.totalorder %s168, %s184
    %p186 = scmp.eq.s32.totalorder %s19, 0
    %p187 = por %p185, %p186
    %p188 = scmp.le.s32.totalorder 1, %s13
    %p189 = scmp.lt.s32.totalorder %s13, 3
    %p190 = pnand %p188, %p189
    %p191 = pneg %p190
    // Predicated region
    $region9: #{block_forward.5} parent=5 // pred_check
      _
    $region10: #{block_forward.5} parent=5 // pred_check_branch
      %193 = sbr.rel (%p190) target = $region12
    $region11: #{block_forward.5} parent=5 // pred_region
      %s194 = ssub.s32 %s13, 1
      // Predicated region
      $region13: #{block_forward.5} parent=11 // pred_check
        %p195 = pneg %p60
      $region14: #{block_forward.5} parent=11 // pred_check_branch
        %197 = sbr.rel (%p195) target = $region16
      $region15: #{block_forward.5} parent=11 // pred_region
        _
      $region16: #{block_forward.5} parent=11 // pred_fallthru
        _
      // Predicated region
      $region17: #{block_forward.5} parent=11 // pred_check
        %p198 = pneg %p81
      $region18: #{block_forward.5} parent=11 // pred_check_branch
        %200 = sbr.rel (%p198) target = $region20
      $region19: #{block_forward.5} parent=11 // pred_region
        _
      $region20: #{block_forward.5} parent=11 // pred_fallthru
        _
      // Predicated region
      $region21: #{block_forward.5} parent=11 // pred_check
        %p201 = pneg %p102
      $region22: #{block_forward.5} parent=11 // pred_check_branch
        %203 = sbr.rel (%p201) target = $region24
      $region23: #{block_forward.5} parent=11 // pred_region
        _
      $region24: #{block_forward.5} parent=11 // pred_fallthru
        _
    $region12: #{block_forward.5} parent=5 // pred_fallthru
      _
    %p204 = scmp.lt.s32.totalorder %s13, 2
    // Predicated region
    $region25: #{block_forward.5} parent=5 // pred_check
      %p205 = pneg %p204
    $region26: #{block_forward.5} parent=5 // pred_check_branch
      %207 = sbr.rel (%p205) target = $region28
    $region27: #{block_forward.5} parent=5 // pred_region
      // Predicated region
      $region29: #{block_forward.5} parent=27 // pred_check
        %p208 = pneg %p33
      $region30: #{block_forward.5} parent=27 // pred_check_branch
        %210 = sbr.rel (%p208) target = $region32
      $region31: #{block_forward.5} parent=27 // pred_region
        %s211 = smul.u32 8, %s13
        %p212 = scmp.lt.s32.totalorder %s211, 15
        %s213 = scalar_select %p212, %s211, 15
        %s214 = smul.addr %s213, 8
        %s215 = scalar_lea.vmem %s0, %s214
        %s216 = smul.u32 8, %s13
      $region32: #{block_forward.5} parent=27 // pred_fallthru
        _
    $region28: #{block_forward.5} parent=5 // pred_fallthru
      _
    %p217 = scmp.le.s32.totalorder 1, %s13
    %p218 = scmp.lt.s32.totalorder %s13, 3
    %p219 = pnand %p217, %p218
    %p220 = pneg %p219
    // Predicated region
    $region33: #{block_forward.5} parent=5 // pred_check
      _
    $region34: #{block_forward.5} parent=5 // pred_check_branch
      %222 = sbr.rel (%p219) target = $region36
    $region35: #{block_forward.5} parent=5 // pred_region
      %s223 = ssub.s32 %s13, 1
      %s224 = smul.u32 8, %s18
      %p225 = scmp.lt.s32.totalorder %s224, 15
      %s226 = scalar_select %p225, %s224, 15
      %s227 = smul.addr %s226, 8
      %s228 = scalar_lea.vmem %s0, %s227
      %p229 = pneg %p39
      %p230 = pneg %p36
      %p231 = pneg %p60
      %p232 = pneg %p57
      %p233 = pneg %p81
      %p234 = pneg %p78
      %p235 = pneg %p102
      %p236 = pneg %p99
      %p237 = pneg %p128
      %p238 = pneg %p125
      %s239 = smul.u32 8, %s18
      %p240 = scmp.lt.s32.totalorder %s239, 15
      %s241 = scalar_select %p240, %s239, 15
      %s242 = smul.addr %s241, 8
      %s243 = scalar_lea.vmem %s4, %s242
      %p244 = pneg %p154
      %p245 = pneg %p151
      %p246 = scmp.lt.s32.totalorder %s18, 1
      %s247 = scalar_select %p246, %s18, 1
      %s248 = smul.addr %s247, 8
      %s249 = scalar_lea.vmem %s5, %s248
      %p250 = pneg %p180
      %p251 = pneg %p177
      %p252 = scmp.lt.s32.totalorder %s18, 1
      %s253 = scalar_select %p252, %s18, 1
      %s254 = smul.addr %s253, 8
      %s255 = scalar_lea.vmem %s6, %s254
      %s256 = smul.u32 8, %s18
      %p257 = scmp.lt.s32.totalorder %s256, 15
      %s258 = scalar_select %p257, %s256, 15
      %s259 = smul.addr %s258, 8
      %s260 = scalar_lea.vmem %s0, %s259
      %s261 = smul.u32 8, %s18
      %s262 = smul.u32 8, %s18
      %p263 = scmp.lt.s32.totalorder %s262, 15
      %s264 = scalar_select %p263, %s262, 15
      %s265 = smul.addr %s264, 8
      %s266 = scalar_lea.vmem %s4, %s265
      %s267 = smul.u32 8, %s18
      %p268 = scmp.lt.s32.totalorder %s18, 1
      %s269 = scalar_select %p268, %s18, 1
      %s270 = smul.addr %s269, 8
      %s271 = scalar_lea.vmem %s5, %s270
      %p272 = scmp.lt.s32.totalorder %s18, 1
      %s273 = scalar_select %p272, %s18, 1
      %s274 = smul.addr %s273, 8
      %s275 = scalar_lea.vmem %s6, %s274
      %vm276 = vcmask 31744
      %277 = vst.msk [vmem:[#allocation2] sm:$0xff] %vm276, 0.0
      %278 = vst.msk [vmem:[#allocation2 + $0x8] sm:$0xff] %vm276, 0.0
      %279 = vst.msk [vmem:[#allocation2 + $0x50] sm:$0xff] %vm276, 0.0
      %280 = vst.msk [vmem:[#allocation2 + $0x58] sm:$0xff] %vm276, 0.0
      %v281 = vld [vmem:[%s260] sm:$0xff]
      %v282 = vld [vmem:[%s260 + $0x8] sm:$0xff]
      %v283 = vld [vmem:[%s260 + $0x10] sm:$0xff]
      %v284 = vld [vmem:[%s260 + $0x18] sm:$0xff]
      %v285 = vld [vmem:[%s260 + $0x20] sm:$0xff]
      %v286 = vld [vmem:[%s260 + $0x28] sm:$0xff]
      %v287 = vld [vmem:[%s260 + $0x30] sm:$0xff]
      %v288 = vld [vmem:[%s260 + $0x38] sm:$0xff]
      %v289 = vld [vmem:[%s1] sm:$0x1]
      %v291 = vlaneseq
      %v292 = vshrl.u32 %v291, 7
      %v293 = vsub.s32 0, %v292
      %v294 = vrot.slane %v289, %v293
      %v296 = vmul.f32 %v281, %v294
      %v297 = vmul.f32 %v282, %v294
      %v298 = vmul.f32 %v283, %v294
      %v299 = vmul.f32 %v284, %v294
      %v300 = vmul.f32 %v285, %v294
      %v301 = vmul.f32 %v286, %v294
      %v302 = vmul.f32 %v287, %v294
      %v303 = vmul.f32 %v288, %v294
      %v304 = vld [vmem:[%s2] sm:$0x1]
      %v306 = vlaneseq
      %v307 = vshrl.u32 %v306, 7
      %v308 = vsub.s32 0, %v307
      %v309 = vrot.slane %v304, %v308
      %v311 = vadd.f32 %v296, %v309
      %v312 = vadd.f32 %v297, %v309
      %v313 = vadd.f32 %v298, %v309
      %v314 = vadd.f32 %v299, %v309
      %v315 = vadd.f32 %v300, %v309
      %v316 = vadd.f32 %v301, %v309
      %v317 = vadd.f32 %v302, %v309
      %v318 = vadd.f32 %v303, %v309
      %v319 = vmax.f32 %v311, 0.0
      %v320 = vmax.f32 %v312, 0.0
      %v321 = vmax.f32 %v313, 0.0
      %v322 = vmax.f32 %v314, 0.0
      %v323 = vmax.f32 %v315, 0.0
      %v324 = vmax.f32 %v316, 0.0
      %v325 = vmax.f32 %v317, 0.0
      %v326 = vmax.f32 %v318, 0.0
      %327 = vst.msk [vmem:[#allocation2 + $0x10] sm:$0xff] %vm276, %v319
      %328 = vst.msk [vmem:[#allocation2 + $0x18] sm:$0xff] %vm276, %v320
      %329 = vst.msk [vmem:[#allocation2 + $0x20] sm:$0xff] %vm276, %v321
      %330 = vst.msk [vmem:[#allocation2 + $0x28] sm:$0xff] %vm276, %v322
      %331 = vst.msk [vmem:[#allocation2 + $0x30] sm:$0xff] %vm276, %v323
      %332 = vst.msk [vmem:[#allocation2 + $0x38] sm:$0xff] %vm276, %v324
      %333 = vst.msk [vmem:[#allocation2 + $0x40] sm:$0xff] %vm276, %v325
      %334 = vst.msk [vmem:[#allocation2 + $0x48] sm:$0xff] %vm276, %v326
      %v335 = vlaneseq
      %v336 = vshrl.u32 %v335, 7
      %v337 = vadd.s32 %v336, 8
      %v338 = vadd.s32 %v336, 16
      %v339 = vadd.s32 %v336, 24
      %v340 = vadd.s32 %v336, 32
      %v341 = vadd.s32 %v336, 40
      %v342 = vadd.s32 %v336, 48
      %v343 = vadd.s32 %v336, 56
      %vm344 = vcmp.lt.s32.totalorder %v336, 0
      %v345 = vsub.s32 0, %v336
      %v346 = vsel %vm344, %v345, %v336
      %v347 = vshrl.u32 %v346, 3
      %v348 = vand.u32 %v346, 7
      %v349 = vsub.s32 0, %v348
      %v350 = vsel %vm344, %v349, %v348
      %vm351 = vcmp.lt.s32.totalorder %v337, 0
      %v352 = vsub.s32 0, %v337
      %v353 = vsel %vm351, %v352, %v337
      %v354 = vshrl.u32 %v353, 3
      %v355 = vand.u32 %v353, 7
      %v356 = vsub.s32 0, %v355
      %v357 = vsel %vm351, %v356, %v355
      %vm358 = vcmp.lt.s32.totalorder %v338, 0
      %v359 = vsub.s32 0, %v338
      %v360 = vsel %vm358, %v359, %v338
      %v361 = vshrl.u32 %v360, 3
      %v362 = vand.u32 %v360, 7
      %v363 = vsub.s32 0, %v362
      %v364 = vsel %vm358, %v363, %v362
      %vm365 = vcmp.lt.s32.totalorder %v339, 0
      %v366 = vsub.s32 0, %v339
      %v367 = vsel %vm365, %v366, %v339
      %v368 = vshrl.u32 %v367, 3
      %v369 = vand.u32 %v367, 7
      %v370 = vsub.s32 0, %v369
      %v371 = vsel %vm365, %v370, %v369
      %vm372 = vcmp.lt.s32.totalorder %v340, 0
      %v373 = vsub.s32 0, %v340
      %v374 = vsel %vm372, %v373, %v340
      %v375 = vshrl.u32 %v374, 3
      %v376 = vand.u32 %v374, 7
      %v377 = vsub.s32 0, %v376
      %v378 = vsel %vm372, %v377, %v376
      %vm379 = vcmp.lt.s32.totalorder %v341, 0
      %v380 = vsub.s32 0, %v341
      %v381 = vsel %vm379, %v380, %v341
      %v382 = vshrl.u32 %v381, 3
      %v383 = vand.u32 %v381, 7
      %v384 = vsub.s32 0, %v383
      %v385 = vsel %vm379, %v384, %v383
      %vm386 = vcmp.lt.s32.totalorder %v342, 0
      %v387 = vsub.s32 0, %v342
      %v388 = vsel %vm386, %v387, %v342
      %v389 = vshrl.u32 %v388, 3
      %v390 = vand.u32 %v388, 7
      %v391 = vsub.s32 0, %v390
      %v392 = vsel %vm386, %v391, %v390
      %vm393 = vcmp.lt.s32.totalorder %v343, 0
      %v394 = vsub.s32 0, %v343
      %v395 = vsel %vm393, %v394, %v343
      %v396 = vshrl.u32 %v395, 3
      %v397 = vand.u32 %v395, 7
      %v398 = vsub.s32 0, %v397
      %v399 = vsel %vm393, %v398, %v397
      %vm400 = vcmp.ne.s32.totalorder %v350, 0
      %vm401 = vcmp.ne.s32.totalorder %v357, 0
      %vm402 = vcmp.ne.s32.totalorder %v364, 0
      %vm403 = vcmp.ne.s32.totalorder %v371, 0
      %vm404 = vcmp.ne.s32.totalorder %v378, 0
      %vm405 = vcmp.ne.s32.totalorder %v385, 0
      %vm406 = vcmp.ne.s32.totalorder %v392, 0
      %vm407 = vcmp.ne.s32.totalorder %v399, 0
      %vm408 = vcmp.lt.s32.totalorder %v350, 0
      %vm409 = vcmp.lt.s32.totalorder %v357, 0
      %vm410 = vcmp.lt.s32.totalorder %v364, 0
      %vm411 = vcmp.lt.s32.totalorder %v371, 0
      %vm412 = vcmp.lt.s32.totalorder %v378, 0
      %vm413 = vcmp.lt.s32.totalorder %v385, 0
      %vm414 = vcmp.lt.s32.totalorder %v392, 0
      %vm415 = vcmp.lt.s32.totalorder %v399, 0
      %vm416 = vmand %vm408, %vm400
      %vm417 = vmand %vm409, %vm401
      %vm418 = vmand %vm410, %vm402
      %vm419 = vmand %vm411, %vm403
      %vm420 = vmand %vm412, %vm404
      %vm421 = vmand %vm413, %vm405
      %vm422 = vmand %vm414, %vm406
      %vm423 = vmand %vm415, %vm407
      %v424 = vadd.s32 %v350, 8
      %v425 = vadd.s32 %v357, 8
      %v426 = vadd.s32 %v364, 8
      %v427 = vadd.s32 %v371, 8
      %v428 = vadd.s32 %v378, 8
      %v429 = vadd.s32 %v385, 8
      %v430 = vadd.s32 %v392, 8
      %v431 = vadd.s32 %v399, 8
      %v432 = vsel %vm416, %v424, %v350
      %v433 = vsel %vm417, %v425, %v357
      %v434 = vsel %vm418, %v426, %v364
      %v435 = vsel %vm419, %v427, %v371
      %v436 = vsel %vm420, %v428, %v378
      %v437 = vsel %vm421, %v429, %v385
      %v438 = vsel %vm422, %v430, %v392
      %v439 = vsel %vm423, %v431, %v399
      %vm440 = vcmp.ne.s32.totalorder %v432, 0
      %vm441 = vcmp.ne.s32.totalorder %v433, 0
      %vm442 = vcmp.ne.s32.totalorder %v434, 0
      %vm443 = vcmp.ne.s32.totalorder %v435, 0
      %vm444 = vcmp.ne.s32.totalorder %v436, 0
      %vm445 = vcmp.ne.s32.totalorder %v437, 0
      %vm446 = vcmp.ne.s32.totalorder %v438, 0
      %vm447 = vcmp.ne.s32.totalorder %v439, 0
      %v448 = vsel %vm440, 1, 0
      %v449 = vsel %vm441, 1, 0
      %v450 = vsel %vm442, 1, 0
      %v451 = vsel %vm443, 1, 0
      %v452 = vsel %vm444, 1, 0
      %v453 = vsel %vm445, 1, 0
      %v454 = vsel %vm446, 1, 0
      %v455 = vsel %vm447, 1, 0
      %v456 = vcvt.s32.f32 %v448
      %v457 = vcvt.s32.f32 %v449
      %v458 = vcvt.s32.f32 %v450
      %v459 = vcvt.s32.f32 %v451
      %v460 = vcvt.s32.f32 %v452
      %v461 = vcvt.s32.f32 %v453
      %v462 = vcvt.s32.f32 %v454
      %v463 = vcvt.s32.f32 %v455
      %vm464 = vcmp.ne.s32.totalorder %v432, 7
      %vm465 = vcmp.ne.s32.totalorder %v433, 7
      %vm466 = vcmp.ne.s32.totalorder %v434, 7
      %vm467 = vcmp.ne.s32.totalorder %v435, 7
      %vm468 = vcmp.ne.s32.totalorder %v436, 7
      %vm469 = vcmp.ne.s32.totalorder %v437, 7
      %vm470 = vcmp.ne.s32.totalorder %v438, 7
      %vm471 = vcmp.ne.s32.totalorder %v439, 7
      %v472 = vsel %vm464, 1, 0
      %v473 = vsel %vm465, 1, 0
      %v474 = vsel %vm466, 1, 0
      %v475 = vsel %vm467, 1, 0
      %v476 = vsel %vm468, 1, 0
      %v477 = vsel %vm469, 1, 0
      %v478 = vsel %vm470, 1, 0
      %v479 = vsel %vm471, 1, 0
      %v480 = vcvt.s32.f32 %v472
      %v481 = vcvt.s32.f32 %v473
      %v482 = vcvt.s32.f32 %v474
      %v483 = vcvt.s32.f32 %v475
      %v484 = vcvt.s32.f32 %v476
      %v485 = vcvt.s32.f32 %v477
      %v486 = vcvt.s32.f32 %v478
      %v487 = vcvt.s32.f32 %v479
      %v488 = vld [vmem:[#allocation2 + $0x7] sm:$0xff]
      %v489 = vld [vmem:[#allocation2 + $0xf] sm:$0xff]
      %v490 = vld [vmem:[#allocation2 + $0x17] sm:$0xff]
      %v491 = vld [vmem:[#allocation2 + $0x1f] sm:$0xff]
      %v492 = vld [vmem:[#allocation2 + $0x27] sm:$0xff]
      %v493 = vld [vmem:[#allocation2 + $0x2f] sm:$0xff]
      %v494 = vld [vmem:[#allocation2 + $0x37] sm:$0xff]
      %v495 = vld [vmem:[#allocation2 + $0x3f] sm:$0xff]
      %v496 = vmul.f32 %v488, %v456
      %v497 = vmul.f32 %v489, %v457
      %v498 = vmul.f32 %v490, %v458
      %v499 = vmul.f32 %v491, %v459
      %v500 = vmul.f32 %v492, %v460
      %v501 = vmul.f32 %v493, %v461
      %v502 = vmul.f32 %v494, %v462
      %v503 = vmul.f32 %v495, %v463
      %v504 = vld [vmem:[#allocation2 + $0x8] sm:$0xff]
      %v505 = vld [vmem:[#allocation2 + $0x10] sm:$0xff]
      %v506 = vld [vmem:[#allocation2 + $0x18] sm:$0xff]
      %v507 = vld [vmem:[#allocation2 + $0x20] sm:$0xff]
      %v508 = vld [vmem:[#allocation2 + $0x28] sm:$0xff]
      %v509 = vld [vmem:[#allocation2 + $0x30] sm:$0xff]
      %v510 = vld [vmem:[#allocation2 + $0x38] sm:$0xff]
      %v511 = vld [vmem:[#allocation2 + $0x40] sm:$0xff]
      %v512 = vld [vmem:[#allocation2 + $0x9] sm:$0xff]
      %v513 = vld [vmem:[#allocation2 + $0x11] sm:$0xff]
      %v514 = vld [vmem:[#allocation2 + $0x19] sm:$0xff]
      %v515 = vld [vmem:[#allocation2 + $0x21] sm:$0xff]
      %v516 = vld [vmem:[#allocation2 + $0x29] sm:$0xff]
      %v517 = vld [vmem:[#allocation2 + $0x31] sm:$0xff]
      %v518 = vld [vmem:[#allocation2 + $0x39] sm:$0xff]
      %v519 = vld [vmem:[#allocation2 + $0x41] sm:$0xff]
      %v520 = vmul.f32 %v512, %v480
      %v521 = vmul.f32 %v513, %v481
      %v522 = vmul.f32 %v514, %v482
      %v523 = vmul.f32 %v515, %v483
      %v524 = vmul.f32 %v516, %v484
      %v525 = vmul.f32 %v517, %v485
      %v526 = vmul.f32 %v518, %v486
      %v527 = vmul.f32 %v519, %v487
      %536 = vrot.lane.b32.xlu0 %v504, 4
      %v537 = vpop.permute.xlu0 %536
      %538 = vrot.lane.b32.xlu0 %v505, 4
      %v539 = vpop.permute.xlu0 %538
      %540 = vrot.lane.b32.xlu0 %v506, 4
      %v541 = vpop.permute.xlu0 %540
      %542 = vrot.lane.b32.xlu0 %v507, 4
      %v543 = vpop.permute.xlu0 %542
      %544 = vrot.lane.b32.xlu0 %v508, 4
      %v545 = vpop.permute.xlu0 %544
      %546 = vrot.lane.b32.xlu0 %v509, 4
      %v547 = vpop.permute.xlu0 %546
      %548 = vrot.lane.b32.xlu0 %v510, 4
      %v549 = vpop.permute.xlu0 %548
      %550 = vrot.lane.b32.xlu0 %v511, 4
      %v551 = vpop.permute.xlu0 %550
      %568 = vrot.lane.b32.xlu0 %v520, 8
      %v569 = vpop.permute.xlu0 %568
      %570 = vrot.lane.b32.xlu0 %v521, 8
      %v571 = vpop.permute.xlu0 %570
      %572 = vrot.lane.b32.xlu0 %v522, 8
      %v573 = vpop.permute.xlu0 %572
      %574 = vrot.lane.b32.xlu0 %v523, 8
      %v575 = vpop.permute.xlu0 %574
      %576 = vrot.lane.b32.xlu0 %v524, 8
      %v577 = vpop.permute.xlu0 %576
      %578 = vrot.lane.b32.xlu0 %v525, 8
      %v579 = vpop.permute.xlu0 %578
      %580 = vrot.lane.b32.xlu0 %v526, 8
      %v581 = vpop.permute.xlu0 %580
      %582 = vrot.lane.b32.xlu0 %v527, 8
      %v583 = vpop.permute.xlu0 %582
      %v592 = vsel %vm276, %v496, %v537
      %v593 = vsel %vm276, %v497, %v539
      %v594 = vsel %vm276, %v498, %v541
      %v595 = vsel %vm276, %v499, %v543
      %v596 = vsel %vm276, %v500, %v545
      %v597 = vsel %vm276, %v501, %v547
      %v598 = vsel %vm276, %v502, %v549
      %v599 = vsel %vm276, %v503, %v551
      %vm600 = vcmask 64512
      %v601 = vsel %vm600, %v592, %v569
      %v602 = vsel %vm600, %v593, %v571
      %v603 = vsel %vm600, %v594, %v573
      %v604 = vsel %vm600, %v595, %v575
      %v605 = vsel %vm600, %v596, %v577
      %v606 = vsel %vm600, %v597, %v579
      %v607 = vsel %vm600, %v598, %v581
      %v608 = vsel %vm600, %v599, %v583
      %v609 = vld [vmem:[%s3] sm:$0xff]
      %v610 = vld [vmem:[%s3 + $0x8] sm:$0xf]
      %v611 = vld [vmem:[#allocation2 + $0x47] sm:$0xff]
      %v612 = vmul.f32 %v489, %v456
      %v613 = vmul.f32 %v490, %v457
      %v614 = vmul.f32 %v491, %v458
      %v615 = vmul.f32 %v492, %v459
      %v616 = vmul.f32 %v493, %v460
      %v617 = vmul.f32 %v494, %v461
      %v618 = vmul.f32 %v495, %v462
      %v619 = vmul.f32 %v611, %v463
      %v620 = vld [vmem:[#allocation2 + $0x48] sm:$0xff]
      %v621 = vld [vmem:[#allocation2 + $0x49] sm:$0xff]
      %v622 = vmul.f32 %v513, %v480
      %v623 = vmul.f32 %v514, %v481
      %v624 = vmul.f32 %v515, %v482
      %v625 = vmul.f32 %v516, %v483
      %v626 = vmul.f32 %v517, %v484
      %v627 = vmul.f32 %v518, %v485
      %v628 = vmul.f32 %v519, %v486
      %v629 = vmul.f32 %v621, %v487
      %631 = vrot.lane.b32.xlu0 %v620, 4
      %v632 = vpop.permute.xlu0 %631
      %642 = vrot.lane.b32.xlu0 %v622, 8
      %v643 = vpop.permute.xlu0 %642
      %644 = vrot.lane.b32.xlu0 %v623, 8
      %v645 = vpop.permute.xlu0 %644
      %646 = vrot.lane.b32.xlu0 %v624, 8
      %v647 = vpop.permute.xlu0 %646
      %648 = vrot.lane.b32.xlu0 %v625, 8
      %v649 = vpop.permute.xlu0 %648
      %650 = vrot.lane.b32.xlu0 %v626, 8
      %v651 = vpop.permute.xlu0 %650
      %652 = vrot.lane.b32.xlu0 %v627, 8
      %v653 = vpop.permute.xlu0 %652
      %654 = vrot.lane.b32.xlu0 %v628, 8
      %v655 = vpop.permute.xlu0 %654
      %656 = vrot.lane.b32.xlu0 %v629, 8
      %v657 = vpop.permute.xlu0 %656
      %v666 = vsel %vm276, %v612, %v539
      %v667 = vsel %vm276, %v613, %v541
      %v668 = vsel %vm276, %v614, %v543
      %v669 = vsel %vm276, %v615, %v545
      %v670 = vsel %vm276, %v616, %v547
      %v671 = vsel %vm276, %v617, %v549
      %v672 = vsel %vm276, %v618, %v551
      %v673 = vsel %vm276, %v619, %v632
      %v674 = vsel %vm600, %v666, %v643
      %v675 = vsel %vm600, %v667, %v645
      %v676 = vsel %vm600, %v668, %v647
      %v677 = vsel %vm600, %v669, %v649
      %v678 = vsel %vm600, %v670, %v651
      %v679 = vsel %vm600, %v671, %v653
      %v680 = vsel %vm600, %v672, %v655
      %v681 = vsel %vm600, %v673, %v657
      %s682 = scalar_lea.vmem %s3, 16
      %v683 = vld [vmem:[%s682] sm:$0xff]
      %v684 = vld [vmem:[%s682 + $0x8] sm:$0xf]
      %vm685 = vcmask 97280
      %v687 = vsel %vm685, %v674, 0
      %v690 = vsel %vm685, %v675, 0
      %v693 = vsel %vm685, %v676, 0
      %v696 = vsel %vm685, %v677, 0
      %v699 = vsel %vm685, %v678, 0
      %v702 = vsel %vm685, %v679, 0
      %v705 = vsel %vm685, %v680, 0
      %v708 = vsel %vm685, %v681, 0
      %vm710 = vcmask 1043456
      %v712 = vsel %vm710, %v684, 0
      %714 = vmatprep.subr.mxu0 0.0
      %715 = vmatpush1.msra.mxu0 0.0
      %716 = vmatprep.subr.mxu0 0.0
      %717 = vmatpush1.msra.mxu0 0.0
      %718 = vmatprep.subr.mxu0 0.0
      %719 = vmatpush1.msra.mxu0 0.0
      %720 = vmatprep.subr.mxu0 0.0
      %721 = vmatpush1.msra.mxu0 0.0
      %722 = vmatprep.subr.mxu0 0.0
      %723 = vmatpush1.msra.mxu0 0.0
      %724 = vmatprep.subr.mxu0 0.0
      %725 = vmatpush1.msra.mxu0 0.0
      %726 = vmatprep.subr.mxu0 0.0
      %727 = vmatpush1.msra.mxu0 0.0
      %728 = vmatprep.subr.mxu0 0.0
      %729 = vmatpush1.msra.mxu0 0.0
      %730 = vmatprep.subr.mxu0 0.0
      %731 = vmatpush1.msra.mxu0 0.0
      %732 = vmatprep.subr.mxu0 0.0
      %733 = vmatpush1.msra.mxu0 0.0
      %734 = vmatprep.subr.mxu0 0.0
      %735 = vmatpush1.msra.mxu0 0.0
      %736 = vmatprep.subr.mxu0 0.0
      %737 = vmatpush1.msra.mxu0 0.0
      %738 = vmatprep.subr.mxu0 0.0
      %739 = vmatpush1.msra.mxu0 0.0
      %740 = vmatprep.subr.mxu0 0.0
      %741 = vmatpush1.msra.mxu0 0.0
      %742 = vmatprep.subr.mxu0 0.0
      %743 = vmatpush1.msra.mxu0 %v712
      %744 = vmatprep.subr.mxu0 0.0
      %745 = vmatpush1.msra.mxu0 %v683
      %746 = vmatprep.subr.mxu0 0.0
      %747 = vmatpush2.msra.mxu0 0.0
      %748 = vmatprep.subr.mxu0 0.0
      %749 = vmatpush2.msra.mxu0 0.0
      %750 = vmatprep.subr.mxu0 0.0
      %751 = vmatpush2.msra.mxu0 0.0
      %752 = vmatprep.subr.mxu0 0.0
      %753 = vmatpush2.msra.mxu0 0.0
      %754 = vmatprep.subr.mxu0 0.0
      %755 = vmatpush2.msra.mxu0 0.0
      %756 = vmatprep.subr.mxu0 0.0
      %757 = vmatpush2.msra.mxu0 0.0
      %758 = vmatprep.subr.mxu0 0.0
      %759 = vmatpush2.msra.mxu0 0.0
      %760 = vmatprep.subr.mxu0 0.0
      %761 = vmatpush2.msra.mxu0 0.0
      %762 = vmatprep.subr.mxu0 0.0
      %763 = vmatpush2.msra.mxu0 0.0
      %764 = vmatprep.subr.mxu0 0.0
      %765 = vmatpush2.msra.mxu0 0.0
      %766 = vmatprep.subr.mxu0 0.0
      %767 = vmatpush2.msra.mxu0 0.0
      %768 = vmatprep.subr.mxu0 0.0
      %769 = vmatpush2.msra.mxu0 0.0
      %770 = vmatprep.subr.mxu0 0.0
      %771 = vmatpush2.msra.mxu0 0.0
      %772 = vmatprep.subr.mxu0 0.0
      %773 = vmatpush2.msra.mxu0 0.0
      %774 = vmatprep.subr.mxu0 0.0
      %775 = vmatpush2.msra.mxu0 0.0
      %776 = vmatprep.subr.mxu0 0.0
      %777 = vmatpush2.msra.mxu0 0.0
      %778 = vmatprep.mubr.f32.mxu0 0.0
      %779 = vmatmul.mubr.f32.gmra.mxu0 %v687
      %v780 = vpop.f32.mrf.mxu0
      %v781 = vadd.f32 0.0, %v780
      %v782 = vpop.f32.mrf.mxu0
      %783 = vmatprep.mubr.f32.mxu0 0.0
      %784 = vmatmul.mubr.f32.gmra.mxu0 %v690
      %v785 = vpop.f32.mrf.mxu0
      %v786 = vadd.f32 0.0, %v785
      %v787 = vpop.f32.mrf.mxu0
      %788 = vmatprep.mubr.f32.mxu0 0.0
      %789 = vmatmul.mubr.f32.gmra.mxu0 %v693
      %v790 = vpop.f32.mrf.mxu0
      %v791 = vadd.f32 0.0, %v790
      %v792 = vpop.f32.mrf.mxu0
      %793 = vmatprep.mubr.f32.mxu0 0.0
      %794 = vmatmul.mubr.f32.gmra.mxu0 %v696
      %v795 = vpop.f32.mrf.mxu0
      %v796 = vadd.f32 0.0, %v795
      %v797 = vpop.f32.mrf.mxu0
      %798 = vmatprep.mubr.f32.mxu0 0.0
      %799 = vmatmul.mubr.f32.gmra.mxu0 %v699
      %v800 = vpop.f32.mrf.mxu0
      %v801 = vadd.f32 0.0, %v800
      %v802 = vpop.f32.mrf.mxu0
      %803 = vmatprep.mubr.f32.mxu0 0.0
      %804 = vmatmul.mubr.f32.gmra.mxu0 %v702
      %v805 = vpop.f32.mrf.mxu0
      %v806 = vadd.f32 0.0, %v805
      %v807 = vpop.f32.mrf.mxu0
      %808 = vmatprep.mubr.f32.mxu0 0.0
      %809 = vmatmul.mubr.f32.gmra.mxu0 %v705
      %v810 = vpop.f32.mrf.mxu0
      %v811 = vadd.f32 0.0, %v810
      %v812 = vpop.f32.mrf.mxu0
      %813 = vmatprep.mubr.f32.mxu0 0.0
      %814 = vmatmul.mubr.f32.gmra.mxu0 %v708
      %v815 = vpop.f32.mrf.mxu0
      %v816 = vadd.f32 0.0, %v815
      %v817 = vpop.f32.mrf.mxu0
      %818 = vdwg.mxu0
      %v820 = vsel %vm685, %v601, 0
      %v823 = vsel %vm685, %v602, 0
      %v826 = vsel %vm685, %v603, 0
      %v829 = vsel %vm685, %v604, 0
      %v832 = vsel %vm685, %v605, 0
      %v835 = vsel %vm685, %v606, 0
      %v838 = vsel %vm685, %v607, 0
      %v841 = vsel %vm685, %v608, 0
      %v844 = vsel %vm710, %v610, 0
      %846 = vmatprep.subr.mxu0 0.0
      %847 = vmatpush1.msra.mxu0 0.0
      %848 = vmatprep.subr.mxu0 0.0
      %849 = vmatpush1.msra.mxu0 0.0
      %850 = vmatprep.subr.mxu0 0.0
      %851 = vmatpush1.msra.mxu0 0.0
      %852 = vmatprep.subr.mxu0 0.0
      %853 = vmatpush1.msra.mxu0 0.0
      %854 = vmatprep.subr.mxu0 0.0
      %855 = vmatpush1.msra.mxu0 0.0
      %856 = vmatprep.subr.mxu0 0.0
      %857 = vmatpush1.msra.mxu0 0.0
      %858 = vmatprep.subr.mxu0 0.0
      %859 = vmatpush1.msra.mxu0 0.0
      %860 = vmatprep.subr.mxu0 0.0
      %861 = vmatpush1.msra.mxu0 0.0
      %862 = vmatprep.subr.mxu0 0.0
      %863 = vmatpush1.msra.mxu0 0.0
      %864 = vmatprep.subr.mxu0 0.0
      %865 = vmatpush1.msra.mxu0 0.0
      %866 = vmatprep.subr.mxu0 0.0
      %867 = vmatpush1.msra.mxu0 0.0
      %868 = vmatprep.subr.mxu0 0.0
      %869 = vmatpush1.msra.mxu0 0.0
      %870 = vmatprep.subr.mxu0 0.0
      %871 = vmatpush1.msra.mxu0 0.0
      %872 = vmatprep.subr.mxu0 0.0
      %873 = vmatpush1.msra.mxu0 0.0
      %874 = vmatprep.subr.mxu0 0.0
      %875 = vmatpush1.msra.mxu0 %v844
      %876 = vmatprep.subr.mxu0 0.0
      %877 = vmatpush1.msra.mxu0 %v609
      %878 = vmatprep.subr.mxu0 0.0
      %879 = vmatpush2.msra.mxu0 0.0
      %880 = vmatprep.subr.mxu0 0.0
      %881 = vmatpush2.msra.mxu0 0.0
      %882 = vmatprep.subr.mxu0 0.0
      %883 = vmatpush2.msra.mxu0 0.0
      %884 = vmatprep.subr.mxu0 0.0
      %885 = vmatpush2.msra.mxu0 0.0
      %886 = vmatprep.subr.mxu0 0.0
      %887 = vmatpush2.msra.mxu0 0.0
      %888 = vmatprep.subr.mxu0 0.0
      %889 = vmatpush2.msra.mxu0 0.0
      %890 = vmatprep.subr.mxu0 0.0
      %891 = vmatpush2.msra.mxu0 0.0
      %892 = vmatprep.subr.mxu0 0.0
      %893 = vmatpush2.msra.mxu0 0.0
      %894 = vmatprep.subr.mxu0 0.0
      %895 = vmatpush2.msra.mxu0 0.0
      %896 = vmatprep.subr.mxu0 0.0
      %897 = vmatpush2.msra.mxu0 0.0
      %898 = vmatprep.subr.mxu0 0.0
      %899 = vmatpush2.msra.mxu0 0.0
      %900 = vmatprep.subr.mxu0 0.0
      %901 = vmatpush2.msra.mxu0 0.0
      %902 = vmatprep.subr.mxu0 0.0
      %903 = vmatpush2.msra.mxu0 0.0
      %904 = vmatprep.subr.mxu0 0.0
      %905 = vmatpush2.msra.mxu0 0.0
      %906 = vmatprep.subr.mxu0 0.0
      %907 = vmatpush2.msra.mxu0 0.0
      %908 = vmatprep.subr.mxu0 0.0
      %909 = vmatpush2.msra.mxu0 0.0
      %910 = vmatprep.mubr.f32.mxu0 0.0
      %911 = vmatmul.mubr.f32.gmra.mxu0 %v820
      %v912 = vpop.f32.mrf.mxu0
      %v913 = vadd.f32 %v781, %v912
      %v914 = vpop.f32.mrf.mxu0
      %915 = vmatprep.mubr.f32.mxu0 0.0
      %916 = vmatmul.mubr.f32.gmra.mxu0 %v823
      %v917 = vpop.f32.mrf.mxu0
      %v918 = vadd.f32 %v786, %v917
      %v919 = vpop.f32.mrf.mxu0
      %920 = vmatprep.mubr.f32.mxu0 0.0
      %921 = vmatmul.mubr.f32.gmra.mxu0 %v826
      %v922 = vpop.f32.mrf.mxu0
      %v923 = vadd.f32 %v791, %v922
      %v924 = vpop.f32.mrf.mxu0
      %925 = vmatprep.mubr.f32.mxu0 0.0
      %926 = vmatmul.mubr.f32.gmra.mxu0 %v829
      %v927 = vpop.f32.mrf.mxu0
      %v928 = vadd.f32 %v796, %v927
      %v929 = vpop.f32.mrf.mxu0
      %930 = vmatprep.mubr.f32.mxu0 0.0
      %931 = vmatmul.mubr.f32.gmra.mxu0 %v832
      %v932 = vpop.f32.mrf.mxu0
      %v933 = vadd.f32 %v801, %v932
      %v934 = vpop.f32.mrf.mxu0
      %935 = vmatprep.mubr.f32.mxu0 0.0
      %936 = vmatmul.mubr.f32.gmra.mxu0 %v835
      %v937 = vpop.f32.mrf.mxu0
      %v938 = vadd.f32 %v806, %v937
      %v939 = vpop.f32.mrf.mxu0
      %940 = vmatprep.mubr.f32.mxu0 0.0
      %941 = vmatmul.mubr.f32.gmra.mxu0 %v838
      %v942 = vpop.f32.mrf.mxu0
      %v943 = vadd.f32 %v811, %v942
      %v944 = vpop.f32.mrf.mxu0
      %945 = vmatprep.mubr.f32.mxu0 0.0
      %946 = vmatmul.mubr.f32.gmra.mxu0 %v841
      %v947 = vpop.f32.mrf.mxu0
      %v948 = vadd.f32 %v816, %v947
      %v949 = vpop.f32.mrf.mxu0
      %950 = vdwg.mxu0
      %v951 = vld [vmem:[#allocation2 + $0x17] sm:$0xff]
      %v952 = vld [vmem:[#allocation2 + $0x1f] sm:$0xff]
      %v953 = vld [vmem:[#allocation2 + $0x27] sm:$0xff]
      %v954 = vld [vmem:[#allocation2 + $0x2f] sm:$0xff]
      %v955 = vld [vmem:[#allocation2 + $0x37] sm:$0xff]
      %v956 = vld [vmem:[#allocation2 + $0x3f] sm:$0xff]
      %v957 = vld [vmem:[#allocation2 + $0x47] sm:$0xff]
      %v958 = vld [vmem:[#allocation2 + $0x4f] sm:$0xff]
      %v959 = vmul.f32 %v951, %v456
      %v960 = vmul.f32 %v952, %v457
      %v961 = vmul.f32 %v953, %v458
      %v962 = vmul.f32 %v954, %v459
      %v963 = vmul.f32 %v955, %v460
      %v964 = vmul.f32 %v956, %v461
      %v965 = vmul.f32 %v957, %v462
      %v966 = vmul.f32 %v958, %v463
      %v967 = vld [vmem:[#allocation2 + $0x18] sm:$0xff]
      %v968 = vld [vmem:[#allocation2 + $0x20] sm:$0xff]
      %v969 = vld [vmem:[#allocation2 + $0x28] sm:$0xff]
      %v970 = vld [vmem:[#allocation2 + $0x30] sm:$0xff]
      %v971 = vld [vmem:[#allocation2 + $0x38] sm:$0xff]
      %v972 = vld [vmem:[#allocation2 + $0x40] sm:$0xff]
      %v973 = vld [vmem:[#allocation2 + $0x48] sm:$0xff]
      %v974 = vld [vmem:[#allocation2 + $0x50] sm:$0xff]
      %v975 = vld [vmem:[#allocation2 + $0x19] sm:$0xff]
      %v976 = vld [vmem:[#allocation2 + $0x21] sm:$0xff]
      %v977 = vld [vmem:[#allocation2 + $0x29] sm:$0xff]
      %v978 = vld [vmem:[#allocation2 + $0x31] sm:$0xff]
      %v979 = vld [vmem:[#allocation2 + $0x39] sm:$0xff]
      %v980 = vld [vmem:[#allocation2 + $0x41] sm:$0xff]
      %v981 = vld [vmem:[#allocation2 + $0x49] sm:$0xff]
      %v982 = vld [vmem:[#allocation2 + $0x51] sm:$0xff]
      %v983 = vmul.f32 %v975, %v480
      %v984 = vmul.f32 %v976, %v481
      %v985 = vmul.f32 %v977, %v482
      %v986 = vmul.f32 %v978, %v483
      %v987 = vmul.f32 %v979, %v484
      %v988 = vmul.f32 %v980, %v485
      %v989 = vmul.f32 %v981, %v486
      %v990 = vmul.f32 %v982, %v487
      %999 = vrot.lane.b32.xlu0 %v967, 4
      %v1000 = vpop.permute.xlu0 %999
      %1001 = vrot.lane.b32.xlu0 %v968, 4
      %v1002 = vpop.permute.xlu0 %1001
      %1003 = vrot.lane.b32.xlu0 %v969, 4
      %v1004 = vpop.permute.xlu0 %1003
      %1005 = vrot.lane.b32.xlu0 %v970, 4
      %v1006 = vpop.permute.xlu0 %1005
      %1007 = vrot.lane.b32.xlu0 %v971, 4
      %v1008 = vpop.permute.xlu0 %1007
      %1009 = vrot.lane.b32.xlu0 %v972, 4
      %v1010 = vpop.permute.xlu0 %1009
      %1011 = vrot.lane.b32.xlu0 %v973, 4
      %v1012 = vpop.permute.xlu0 %1011
      %1013 = vrot.lane.b32.xlu0 %v974, 4
      %v1014 = vpop.permute.xlu0 %1013
      %1031 = vrot.lane.b32.xlu0 %v983, 8
      %v1032 = vpop.permute.xlu0 %1031
      %1033 = vrot.lane.b32.xlu0 %v984, 8
      %v1034 = vpop.permute.xlu0 %1033
      %1035 = vrot.lane.b32.xlu0 %v985, 8
      %v1036 = vpop.permute.xlu0 %1035
      %1037 = vrot.lane.b32.xlu0 %v986, 8
      %v1038 = vpop.permute.xlu0 %1037
      %1039 = vrot.lane.b32.xlu0 %v987, 8
      %v1040 = vpop.permute.xlu0 %1039
      %1041 = vrot.lane.b32.xlu0 %v988, 8
      %v1042 = vpop.permute.xlu0 %1041
      %1043 = vrot.lane.b32.xlu0 %v989, 8
      %v1044 = vpop.permute.xlu0 %1043
      %1045 = vrot.lane.b32.xlu0 %v990, 8
      %v1046 = vpop.permute.xlu0 %1045
      %v1055 = vsel %vm276, %v959, %v1000
      %v1056 = vsel %vm276, %v960, %v1002
      %v1057 = vsel %vm276, %v961, %v1004
      %v1058 = vsel %vm276, %v962, %v1006
      %v1059 = vsel %vm276, %v963, %v1008
      %v1060 = vsel %vm276, %v964, %v1010
      %v1061 = vsel %vm276, %v965, %v1012
      %v1062 = vsel %vm276, %v966, %v1014
      %v1063 = vsel %vm600, %v1055, %v1032
      %v1064 = vsel %vm600, %v1056, %v1034
      %v1065 = vsel %vm600, %v1057, %v1036
      %v1066 = vsel %vm600, %v1058, %v1038
      %v1067 = vsel %vm600, %v1059, %v1040
      %v1068 = vsel %vm600, %v1060, %v1042
      %v1069 = vsel %vm600, %v1061, %v1044
      %v1070 = vsel %vm600, %v1062, %v1046
      %s1071 = scalar_lea.vmem %s3, 32
      %v1072 = vld [vmem:[%s1071] sm:$0xff]
      %v1073 = vld [vmem:[%s1071 + $0x8] sm:$0xf]
      %v1075 = vsel %vm685, %v1063, 0
      %v1078 = vsel %vm685, %v1064, 0
      %v1081 = vsel %vm685, %v1065, 0
      %v1084 = vsel %vm685, %v1066, 0
      %v1087 = vsel %vm685, %v1067, 0
      %v1090 = vsel %vm685, %v1068, 0
      %v1093 = vsel %vm685, %v1069, 0
      %v1096 = vsel %vm685, %v1070, 0
      %v1099 = vsel %vm710, %v1073, 0
      %1101 = vmatprep.subr.mxu0 0.0
      %1102 = vmatpush1.msra.mxu0 0.0
      %1103 = vmatprep.subr.mxu0 0.0
      %1104 = vmatpush1.msra.mxu0 0.0
      %1105 = vmatprep.subr.mxu0 0.0
      %1106 = vmatpush1.msra.mxu0 0.0
      %1107 = vmatprep.subr.mxu0 0.0
      %1108 = vmatpush1.msra.mxu0 0.0
      %1109 = vmatprep.subr.mxu0 0.0
      %1110 = vmatpush1.msra.mxu0 0.0
      %1111 = vmatprep.subr.mxu0 0.0
      %1112 = vmatpush1.msra.mxu0 0.0
      %1113 = vmatprep.subr.mxu0 0.0
      %1114 = vmatpush1.msra.mxu0 0.0
      %1115 = vmatprep.subr.mxu0 0.0
      %1116 = vmatpush1.msra.mxu0 0.0
      %1117 = vmatprep.subr.mxu0 0.0
      %1118 = vmatpush1.msra.mxu0 0.0
      %1119 = vmatprep.subr.mxu0 0.0
      %1120 = vmatpush1.msra.mxu0 0.0
      %1121 = vmatprep.subr.mxu0 0.0
      %1122 = vmatpush1.msra.mxu0 0.0
      %1123 = vmatprep.subr.mxu0 0.0
      %1124 = vmatpush1.msra.mxu0 0.0
      %1125 = vmatprep.subr.mxu0 0.0
      %1126 = vmatpush1.msra.mxu0 0.0
      %1127 = vmatprep.subr.mxu0 0.0
      %1128 = vmatpush1.msra.mxu0 0.0
      %1129 = vmatprep.subr.mxu0 0.0
      %1130 = vmatpush1.msra.mxu0 %v1099
      %1131 = vmatprep.subr.mxu0 0.0
      %1132 = vmatpush1.msra.mxu0 %v1072
      %1133 = vmatprep.subr.mxu0 0.0
      %1134 = vmatpush2.msra.mxu0 0.0
      %1135 = vmatprep.subr.mxu0 0.0
      %1136 = vmatpush2.msra.mxu0 0.0
      %1137 = vmatprep.subr.mxu0 0.0
      %1138 = vmatpush2.msra.mxu0 0.0
      %1139 = vmatprep.subr.mxu0 0.0
      %1140 = vmatpush2.msra.mxu0 0.0
      %1141 = vmatprep.subr.mxu0 0.0
      %1142 = vmatpush2.msra.mxu0 0.0
      %1143 = vmatprep.subr.mxu0 0.0
      %1144 = vmatpush2.msra.mxu0 0.0
      %1145 = vmatprep.subr.mxu0 0.0
      %1146 = vmatpush2.msra.mxu0 0.0
      %1147 = vmatprep.subr.mxu0 0.0
      %1148 = vmatpush2.msra.mxu0 0.0
      %1149 = vmatprep.subr.mxu0 0.0
      %1150 = vmatpush2.msra.mxu0 0.0
      %1151 = vmatprep.subr.mxu0 0.0
      %1152 = vmatpush2.msra.mxu0 0.0
      %1153 = vmatprep.subr.mxu0 0.0
      %1154 = vmatpush2.msra.mxu0 0.0
      %1155 = vmatprep.subr.mxu0 0.0
      %1156 = vmatpush2.msra.mxu0 0.0
      %1157 = vmatprep.subr.mxu0 0.0
      %1158 = vmatpush2.msra.mxu0 0.0
      %1159 = vmatprep.subr.mxu0 0.0
      %1160 = vmatpush2.msra.mxu0 0.0
      %1161 = vmatprep.subr.mxu0 0.0
      %1162 = vmatpush2.msra.mxu0 0.0
      %1163 = vmatprep.subr.mxu0 0.0
      %1164 = vmatpush2.msra.mxu0 0.0
      %1165 = vmatprep.mubr.f32.mxu0 0.0
      %1166 = vmatmul.mubr.f32.gmra.mxu0 %v1075
      %v1167 = vpop.f32.mrf.mxu0
      %v1168 = vadd.f32 0.0, %v1167
      %v1169 = vpop.f32.mrf.mxu0
      %1170 = vmatprep.mubr.f32.mxu0 0.0
      %1171 = vmatmul.mubr.f32.gmra.mxu0 %v1078
      %v1172 = vpop.f32.mrf.mxu0
      %v1173 = vadd.f32 0.0, %v1172
      %v1174 = vpop.f32.mrf.mxu0
      %1175 = vmatprep.mubr.f32.mxu0 0.0
      %1176 = vmatmul.mubr.f32.gmra.mxu0 %v1081
      %v1177 = vpop.f32.mrf.mxu0
      %v1178 = vadd.f32 0.0, %v1177
      %v1179 = vpop.f32.mrf.mxu0
      %1180 = vmatprep.mubr.f32.mxu0 0.0
      %1181 = vmatmul.mubr.f32.gmra.mxu0 %v1084
      %v1182 = vpop.f32.mrf.mxu0
      %v1183 = vadd.f32 0.0, %v1182
      %v1184 = vpop.f32.mrf.mxu0
      %1185 = vmatprep.mubr.f32.mxu0 0.0
      %1186 = vmatmul.mubr.f32.gmra.mxu0 %v1087
      %v1187 = vpop.f32.mrf.mxu0
      %v1188 = vadd.f32 0.0, %v1187
      %v1189 = vpop.f32.mrf.mxu0
      %1190 = vmatprep.mubr.f32.mxu0 0.0
      %1191 = vmatmul.mubr.f32.gmra.mxu0 %v1090
      %v1192 = vpop.f32.mrf.mxu0
      %v1193 = vadd.f32 0.0, %v1192
      %v1194 = vpop.f32.mrf.mxu0
      %1195 = vmatprep.mubr.f32.mxu0 0.0
      %1196 = vmatmul.mubr.f32.gmra.mxu0 %v1093
      %v1197 = vpop.f32.mrf.mxu0
      %v1198 = vadd.f32 0.0, %v1197
      %v1199 = vpop.f32.mrf.mxu0
      %1200 = vmatprep.mubr.f32.mxu0 0.0
      %1201 = vmatmul.mubr.f32.gmra.mxu0 %v1096
      %v1202 = vpop.f32.mrf.mxu0
      %v1203 = vadd.f32 0.0, %v1202
      %v1204 = vpop.f32.mrf.mxu0
      %1205 = vdwg.mxu0
      %v1206 = vadd.f32 %v913, %v1168
      %v1207 = vadd.f32 %v918, %v1173
      %v1208 = vadd.f32 %v923, %v1178
      %v1209 = vadd.f32 %v928, %v1183
      %v1210 = vadd.f32 %v933, %v1188
      %v1211 = vadd.f32 %v938, %v1193
      %v1212 = vadd.f32 %v943, %v1198
      %v1213 = vadd.f32 %v948, %v1203
      %1214 = vst.msk [vmem:[%s266] sm:$0xff] %vm276, %v1206
      %1215 = vst.msk [vmem:[%s266 + $0x8] sm:$0xff] %vm276, %v1207
      %1216 = vst.msk [vmem:[%s266 + $0x10] sm:$0xff] %vm276, %v1208
      %1217 = vst.msk [vmem:[%s266 + $0x18] sm:$0xff] %vm276, %v1209
      %1218 = vst.msk [vmem:[%s266 + $0x20] sm:$0xff] %vm276, %v1210
      %1219 = vst.msk [vmem:[%s266 + $0x28] sm:$0xff] %vm276, %v1211
      %1220 = vst.msk [vmem:[%s266 + $0x30] sm:$0xff] %vm276, %v1212
      %1221 = vst.msk [vmem:[%s266 + $0x38] sm:$0xff] %vm276, %v1213
      %v1222 = vsel %vm276, %v1206, 0.0
      %v1223 = vsel %vm276, %v1207, 0.0
      %v1224 = vadd.f32 %v1222, %v1223
      %v1225 = vsel %vm276, %v1208, 0.0
      %v1226 = vadd.f32 %v1224, %v1225
      %v1227 = vsel %vm276, %v1209, 0.0
      %v1228 = vadd.f32 %v1226, %v1227
      %v1229 = vsel %vm276, %v1210, 0.0
      %v1230 = vadd.f32 %v1228, %v1229
      %v1231 = vsel %vm276, %v1211, 0.0
      %v1232 = vadd.f32 %v1230, %v1231
      %v1233 = vsel %vm276, %v1212, 0.0
      %v1234 = vadd.f32 %v1232, %v1233
      %v1235 = vsel %vm276, %v1213, 0.0
      %v1236 = vadd.f32 %v1234, %v1235
      %v1237 = vrot.slane %v1236, 4
      %v1238 = vadd.f32 %v1236, %v1237
      %v1239 = vrot.slane %v1238, 2
      %v1240 = vadd.f32 %v1238, %v1239
      %v1241 = vrot.slane %v1240, 1
      %v1242 = vadd.f32 %v1240, %v1241
      %1243 = vst.msk [vmem:[%s271] sm:$0xff] %vm276, %v1242
      %v1244 = vmul.f32 %v1206, %v1206
      %v1245 = vmul.f32 %v1207, %v1207
      %v1246 = vmul.f32 %v1208, %v1208
      %v1247 = vmul.f32 %v1209, %v1209
      %v1248 = vmul.f32 %v1210, %v1210
      %v1249 = vmul.f32 %v1211, %v1211
      %v1250 = vmul.f32 %v1212, %v1212
      %v1251 = vmul.f32 %v1213, %v1213
      %v1252 = vsel %vm276, %v1244, 0.0
      %v1253 = vsel %vm276, %v1245, 0.0
      %v1254 = vadd.f32 %v1252, %v1253
      %v1255 = vsel %vm276, %v1246, 0.0
      %v1256 = vadd.f32 %v1254, %v1255
      %v1257 = vsel %vm276, %v1247, 0.0
      %v1258 = vadd.f32 %v1256, %v1257
      %v1259 = vsel %vm276, %v1248, 0.0
      %v1260 = vadd.f32 %v1258, %v1259
      %v1261 = vsel %vm276, %v1249, 0.0
      %v1262 = vadd.f32 %v1260, %v1261
      %v1263 = vsel %vm276, %v1250, 0.0
      %v1264 = vadd.f32 %v1262, %v1263
      %v1265 = vsel %vm276, %v1251, 0.0
      %v1266 = vadd.f32 %v1264, %v1265
      %v1267 = vrot.slane %v1266, 4
      %v1268 = vadd.f32 %v1266, %v1267
      %v1269 = vrot.slane %v1268, 2
      %v1270 = vadd.f32 %v1268, %v1269
      %v1271 = vrot.slane %v1270, 1
      %v1272 = vadd.f32 %v1270, %v1271
      %1273 = vst.msk [vmem:[%s275] sm:$0xff] %vm276, %v1272
      %s1274 = smul.u32 8, %s18
      %p1275 = scmp.lt.s32.totalorder %s1274, 15
      %s1276 = scalar_select %p1275, %s1274, 15
      %s1277 = smul.addr %s1276, 8
      %s1278 = scalar_lea.vmem %s4, %s1277
      %p1279 = scmp.lt.s32.totalorder %s18, 1
      %s1280 = scalar_select %p1279, %s18, 1
      %s1281 = smul.addr %s1280, 8
      %s1282 = scalar_lea.vmem %s5, %s1281
      %p1283 = scmp.lt.s32.totalorder %s18, 1
      %s1284 = scalar_select %p1283, %s18, 1
      %s1285 = smul.addr %s1284, 8
      %s1286 = scalar_lea.vmem %s6, %s1285
      // Predicated region
      $region37: #{block_forward.5} parent=35 // pred_check
        %p1287 = pneg %p125
      $region38: #{block_forward.5} parent=35 // pred_check_branch
        %1289 = sbr.rel (%p1287) target = $region40
      $region39: #{block_forward.5} parent=35 // pred_region
        %s1290 = smul.u32 8, %s18
      $region40: #{block_forward.5} parent=35 // pred_fallthru
        _
      // Predicated region
      $region41: #{block_forward.5} parent=35 // pred_check
        %p1291 = pneg %p151
      $region42: #{block_forward.5} parent=35 // pred_check_branch
        %1293 = sbr.rel (%p1291) target = $region44
      $region43: #{block_forward.5} parent=35 // pred_region
        _
      $region44: #{block_forward.5} parent=35 // pred_fallthru
        _
      // Predicated region
      $region45: #{block_forward.5} parent=35 // pred_check
        %p1294 = pneg %p177
      $region46: #{block_forward.5} parent=35 // pred_check_branch
        %1296 = sbr.rel (%p1294) target = $region48
      $region47: #{block_forward.5} parent=35 // pred_region
        _
      $region48: #{block_forward.5} parent=35 // pred_fallthru
        _
    $region36: #{block_forward.5} parent=5 // pred_fallthru
      _
    %p1297 = scmp.le.s32.totalorder 2, %s13
    // Predicated region
    $region49: #{block_forward.5} parent=5 // pred_check
      %p1298 = pneg %p1297
    $region50: #{block_forward.5} parent=5 // pred_check_branch
      %1300 = sbr.rel (%p1298) target = $region52
    $region51: #{block_forward.5} parent=5 // pred_region
      %s1301 = ssub.s32 %s13, 2
      // Predicated region
      $region53: #{block_forward.5} parent=51 // pred_check
        %p1302 = pneg %p131
      $region54: #{block_forward.5} parent=51 // pred_check_branch
        %1304 = sbr.rel (%p1302) target = $region56
      $region55: #{block_forward.5} parent=51 // pred_region
        %s1305 = smul.u32 8, %s19
        %p1306 = scmp.lt.s32.totalorder %s1305, 15
        %s1307 = scalar_select %p1306, %s1305, 15
        %s1308 = smul.addr %s1307, 8
        %s1309 = scalar_lea.vmem %s4, %s1308
      $region56: #{block_forward.5} parent=51 // pred_fallthru
        _
      // Predicated region
      $region57: #{block_forward.5} parent=51 // pred_check
        %p1310 = pneg %p157
      $region58: #{block_forward.5} parent=51 // pred_check_branch
        %1312 = sbr.rel (%p1310) target = $region60
      $region59: #{block_forward.5} parent=51 // pred_region
        %p1313 = scmp.lt.s32.totalorder %s19, 1
        %s1314 = scalar_select %p1313, %s19, 1
        %s1315 = smul.addr %s1314, 8
        %s1316 = scalar_lea.vmem %s5, %s1315
      $region60: #{block_forward.5} parent=51 // pred_fallthru
        _
      // Predicated region
      $region61: #{block_forward.5} parent=51 // pred_check
        %p1317 = pneg %p183
      $region62: #{block_forward.5} parent=51 // pred_check_branch
        %1319 = sbr.rel (%p1317) target = $region64
      $region63: #{block_forward.5} parent=51 // pred_region
        %p1320 = scmp.lt.s32.totalorder %s19, 1
        %s1321 = scalar_select %p1320, %s19, 1
        %s1322 = smul.addr %s1321, 8
        %s1323 = scalar_lea.vmem %s6, %s1322
      $region64: #{block_forward.5} parent=51 // pred_fallthru
        _
    $region52: #{block_forward.5} parent=5 // pred_fallthru
      _
  $region6: #{block_forward.5} parent=0 // loop_footer
    %s17 = sadd.s32 1, %s13
  $region7: #{block_forward.5} parent=0 // loop_footer_branch
    %12 = sbr.rel target = $region3
  $region8: #{block_forward.5} parent=0 // loop_exit
    _

</llo_original>
